<compile_context>
chip_gen: v5e
topology: v5e:2x2
jax: 0.10.0
libtpu: 0.0.40
codegen_flags: <defaults>
</compile_context>

<pallas_src>
import functools

import jax
import jax.numpy as jnp
from jax.experimental import pallas as pl
from jax.experimental.pallas import tpu as pltpu

LANE = 128


def _round_up(x, m):
    return -(-x // m) * m


def _vmem_capacity_bytes():
    # Trace-time hardware query; fall back to the smallest (v7x) VMEM if the
    # query is unavailable on this backend / JAX version.
    try:
        return int(pltpu.get_tpu_info().vmem_capacity_bytes)
    except Exception:
        return 64 * 1024 * 1024


def _dsconv_folded_kernel(x_ref, fw_ref, pwb_ref, o_ref, *,
                          TH, W_out, KH, KW, sh, sw, dh, dw):
    """MXU-folded path (small Cp/Coutp): depthwise folded into pointwise.

    x_ref  : (1, TH_in, Wp, Cp)    halo row window, spatially + channel padded
    fw_ref : (KH*KW, Cp, Coutp)    folded weights dw[kh,kw,c]*pw[c,co], bf16
    pwb_ref: (1, Coutp)            pointwise bias with depthwise bias folded, f32
    o_ref  : (1, TH, W_out, Coutp)
    """
    Cp = x_ref.shape[-1]
    Coutp = o_ref.shape[-1]

    def rslice(kh):
        s = kh * dh
        return pl.ds(s, TH) if sh == 1 else pl.ds(s, TH, sh)

    def cslice(kw):
        s = kw * dw
        return pl.ds(s, W_out) if sw == 1 else pl.ds(s, W_out, sw)

    # One bf16 MXU matmul per tap, f32 accumulation in a single running sum.
    acc = None
    for kh in range(KH):
        for kw in range(KW):
            patch = x_ref[0, rslice(kh), cslice(kw), :]
            lhs = patch.reshape(TH * W_out, Cp).astype(jnp.bfloat16)
            term = jnp.dot(lhs, fw_ref[kh * KW + kw],
                           preferred_element_type=jnp.float32)
            acc = term if acc is None else acc + term
    acc = acc + pwb_ref[...]
    o_ref[...] = acc.reshape(1, TH, W_out, Coutp).astype(o_ref.dtype)


def _dsconv_kernel(x_ref, dww_ref, pww_ref, pwb_ref, o_ref, acc_ref, *,
                   TH, W_out, KH, KW, sh, sw, dh, dw):
    """Generic path: VPU depthwise accumulation + one MXU pointwise matmul.

    x_ref  : (1, TH_in, Wp, Cp)
    dww_ref: (KH*KW, 1, Cp)        depthwise weights, input dtype
    pww_ref: (Cp, Coutp)           pointwise weights, bf16
    pwb_ref: (1, Coutp)            folded bias, f32
    o_ref  : (1, TH, W_out, Coutp)
    acc_ref: (TH, W_out, Cp)       f32 scratch, written exactly once
    """
    Cp = acc_ref.shape[-1]
    Coutp = o_ref.shape[-1]

    def rslice(kh):
        s = kh * dh
        return pl.ds(s, TH) if sh == 1 else pl.ds(s, TH, sh)

    def cslice(kw):
        s = kw * dw
        return pl.ds(s, W_out) if sw == 1 else pl.ds(s, W_out, sw)

    # Depthwise: running vreg sum. Elementwise math stays in the input dtype
    # (bf16 path for bf16 inputs on v6e/v7x), promoted to f32 once per kh row.
    acc = None
    for kh in range(KH):
        row = None
        for kw in range(KW):
            patch = x_ref[0, rslice(kh), cslice(kw), :]
            w = dww_ref[kh * KW + kw]                    # (1, Cp), static index
            term = patch * w
            row = term if row is None else row + term
        rowf = row.astype(jnp.float32)
        acc = rowf if acc is None else acc + rowf
    acc_ref[...] = acc                                   # single scratch write

    # Pointwise 1x1 conv == (TH*W_out, Cp) @ (Cp, Coutp) on the MXU (bf16 in,
    # f32 accumulate). Reshape is a free view since W_out % 8 == 0.
    lhs = acc_ref[...].reshape(TH * W_out, Cp).astype(jnp.bfloat16)
    out = jnp.dot(lhs, pww_ref[...], preferred_element_type=jnp.float32)
    out = out + pwb_ref[...]                              # dw bias already folded
    o_ref[...] = out.reshape(1, TH, W_out, Coutp).astype(o_ref.dtype)


def _run_dsconv(x_pad, weight_args, pwb, *, use_folded, B, H_out, W_outP, Cp,
                Coutp, KH, KW, sh, sw, dh, dw_dil, TH, out_dtype, vmem_limit):
    nH = H_out // TH
    TH_in = (TH - 1) * sh + (KH - 1) * dh + 1
    Hp, Wp = x_pad.shape[1], x_pad.shape[2]

    if nH == 1:
        # Whole (padded) image per step: plain blocked window, no halo needed.
        x_spec = pl.BlockSpec((1, Hp, Wp, Cp), lambda b, t: (b, 0, 0, 0))
    else:
        # Overlapping halo row windows: element-indexed H dimension.
        # TODO(synk): consider pipeline_mode=pl.Buffered(3) here if profiling
        # shows exposed halo re-fetch DMA on v5e.
        x_spec = pl.BlockSpec((1, pl.Element(TH_in), Wp, Cp),
                              lambda b, t: (b, t * TH * sh, 0, 0))

    if use_folded:
        kernel = functools.partial(_dsconv_folded_kernel, TH=TH, W_out=W_outP,
                                   KH=KH, KW=KW, sh=sh, sw=sw, dh=dh, dw=dw_dil)
        in_specs = [
            x_spec,
            pl.BlockSpec((KH * KW, Cp, Coutp), lambda b, t: (0, 0, 0)),
            pl.BlockSpec((1, Coutp), lambda b, t: (0, 0)),
        ]
        scratch_shapes = []
        flops = 2 * B * H_out * W_outP * KH * KW * Cp * Coutp
    else:
        kernel = functools.partial(_dsconv_kernel, TH=TH, W_out=W_outP,
                                   KH=KH, KW=KW, sh=sh, sw=sw, dh=dh, dw=dw_dil)
        in_specs = [
            x_spec,
            pl.BlockSpec((KH * KW, 1, Cp), lambda b, t: (0, 0, 0)),
            pl.BlockSpec((Cp, Coutp), lambda b, t: (0, 0)),
            pl.BlockSpec((1, Coutp), lambda b, t: (0, 0)),
        ]
        scratch_shapes = [pltpu.VMEM((TH, W_outP, Cp), jnp.float32)]
        flops = 2 * B * H_out * W_outP * Cp * (KH * KW + Coutp)

    in_bytes = sum(int(a.size) * a.dtype.itemsize
                   for a in (x_pad, *weight_args, pwb))
    out_bytes = B * H_out * W_outP * Coutp * jnp.dtype(out_dtype).itemsize
    cost = pl.CostEstimate(flops=int(flops), transcendentals=0,
                           bytes_accessed=int(in_bytes + out_bytes))

    return pl.pallas_call(
        kernel,
        out_shape=jax.ShapeDtypeStruct((B, H_out, W_outP, Coutp), out_dtype),
        grid=(B, nH),
        in_specs=in_specs,
        out_specs=pl.BlockSpec((1, TH, W_outP, Coutp),
                               lambda b, t: (b, t, 0, 0)),
        scratch_shapes=scratch_shapes,
        compiler_params=pltpu.CompilerParams(
            dimension_semantics=("parallel", "parallel"),
            vmem_limit_bytes=vmem_limit),
        cost_estimate=cost,
    )(x_pad, *weight_args, pwb)


def depthwise_separable_conv2d(x_nchw, dw_w, dw_b, pw_w, pw_b,
                               *, stride=(1, 1), padding=(0, 0),
                               dilation=(1, 1)):
    """x_nchw: (B, C_in, H, W). Returns (B, C_out, H_out, W_out).

    dw_w: (KH, KW, C_in), dw_b: (C_in,), pw_w: (C_in, C_out), pw_b: (C_out,).
    """
    # TODO(synk): only padding_mode="zeros" with explicit int padding is
    # supported (no "same"/"valid" strings, no reflect/replicate/circular).
    B, C, H, W = x_nchw.shape
    KH, KW, _ = dw_w.shape
    Cout = pw_w.shape[1]
    sh, sw = stride
    ph, pw_pad = padding
    dh, dw_dil = dilation

    H_out = (H + 2 * ph - dh * (KH - 1) - 1) // sh + 1
    W_out = (W + 2 * pw_pad - dw_dil * (KW - 1) - 1) // sw + 1

    Cp = _round_up(C, LANE)              # channels padded to lane width
    Coutp = _round_up(Cout, LANE)
    W_outP = _round_up(W_out, 8)         # sublane-dense stores / free reshapes

    # Extra right padding so the W_outP-wide output window stays in bounds.
    Wp_need = (W_outP - 1) * sw + (KW - 1) * dw_dil + 1
    extra_w = max(0, Wp_need - (W + 2 * pw_pad))

    # ---- boundary glue (fuses under jit): NCHW->NHWC and one pad doing
    # spatial zero-padding AND channel padding together.
    x = jnp.transpose(x_nchw, (0, 2, 3, 1))
    x = jnp.pad(x, ((0, 0), (ph, ph), (pw_pad, pw_pad + extra_w), (0, Cp - C)))
    Hp, Wp = x.shape[1], x.shape[2]

    out_dtype = x_nchw.dtype
    # Fold depthwise bias into the pointwise bias:
    #   (acc + b_dw) @ W_pw + b_pw == acc @ W_pw + (b_dw @ W_pw + b_pw)
    pwb = jnp.pad(dw_b.astype(jnp.float32) @ pw_w.astype(jnp.float32)
                  + pw_b.astype(jnp.float32),
                  (0, Coutp - Cout)).reshape(1, Coutp)

    # Small-channel fast path: fold depthwise into pointwise weights and run
    # everything on the MXU (KH*KW matmuls) — wins while Cp, Coutp <= 256.
    use_folded = (Cp <= 256) and (Coutp <= 256)
    itm = x.dtype.itemsize
    out_itm = jnp.dtype(out_dtype).itemsize
    if use_folded:
        fw = (dw_w[:, :, :, None].astype(jnp.float32)
              * pw_w[None, None].astype(jnp.float32))       # (KH,KW,C,Cout)
        fw = jnp.pad(fw, ((0, 0), (0, 0), (0, Cp - C), (0, Coutp - Cout)))
        fw = fw.reshape(KH * KW, Cp, Coutp).astype(jnp.bfloat16)
        weight_args = (fw,)
        weight_bytes = int(fw.size) * 2 + int(pwb.size) * 4
    else:
        dww = jnp.pad(dw_w, ((0, 0), (0, 0), (0, Cp - C)))
        dww = dww.reshape(KH * KW, 1, Cp).astype(x.dtype)
        pww = jnp.pad(pw_w, ((0, Cp - C), (0, Coutp - Cout))).astype(jnp.bfloat16)
        weight_args = (dww, pww)
        weight_bytes = (int(dww.size) * itm + int(pww.size) * 2
                        + int(pwb.size) * 4)

    # ---- choose TH (output rows per tile) from a generation-dependent budget.
    cap = _vmem_capacity_bytes()
    if cap >= 100 * 1024 * 1024:                 # v5e / v6e: 128 MiB VMEM
        budget, vmem_limit = 56 * 1024 * 1024, 96 * 1024 * 1024
    else:                                        # v7x: 64 MiB VMEM
        budget, vmem_limit = 20 * 1024 * 1024, 48 * 1024 * 1024

    def vmem_bytes(th):
        th_in = (th - 1) * sh + (KH - 1) * dh + 1
        v = 2 * th_in * Wp * Cp * itm            # input window, double-buffered
        v += 2 * th * W_outP * Coutp * out_itm   # output tile, double-buffered
        v += weight_bytes                        # resident (constant-index) blocks
        if use_folded:
            v += th * W_outP * Coutp * 4         # f32 running accumulator
            v += th * W_outP * Cp * itm          # one live input patch
        else:
            v += th * W_outP * Cp * 4            # f32 accumulator scratch
        return v

    divisors = [d for d in range(1, H_out + 1) if H_out % d == 0]
    fitting = [d for d in divisors if vmem_bytes(d) <= budget] or [1]
    TH = max(fitting)                            # biggest tile that fits

    out_nhwc = _run_dsconv(
        x, weight_args, pwb, use_folded=use_folded, B=B, H_out=H_out,
        W_outP=W_outP, Cp=Cp, Coutp=Coutp, KH=KH, KW=KW, sh=sh, sw=sw,
        dh=dh, dw_dil=dw_dil, TH=TH, out_dtype=out_dtype,
        vmem_limit=vmem_limit)

    # Strip width/channel padding, back to NCHW.
    return jnp.transpose(out_nhwc[:, :, :W_out, :Cout], (0, 3, 1, 2))


def _init_params(key, C_in, C_out, KH, KW):
    """Deterministic init mimicking torch.nn.Conv2d default (uniform +/- 1/sqrt(fan_in))."""
    k1, k2, k3, k4 = jax.random.split(key, 4)
    bound_dw = 1.0 / jnp.sqrt(1.0 * KH * KW)
    dw_w = jax.random.uniform(k1, (KH, KW, C_in), jnp.float32, -bound_dw, bound_dw)
    dw_b = jax.random.uniform(k2, (C_in,), jnp.float32, -bound_dw, bound_dw)
    bound_pw = 1.0 / jnp.sqrt(1.0 * C_in)
    pw_w = jax.random.uniform(k3, (C_in, C_out), jnp.float32, -bound_pw, bound_pw)
    pw_b = jax.random.uniform(k4, (C_out,), jnp.float32, -bound_pw, bound_pw)
    return dw_w, dw_b, pw_w, pw_b


def _reference(x_nchw, dw_w, dw_b, pw_w, pw_b, stride, padding, dilation):
    """Pure-JAX reference using lax.conv_general_dilated (NCHW)."""
    C_in = x_nchw.shape[1]
    w_dw = jnp.transpose(dw_w, (2, 0, 1))[:, None, :, :]        # (C_in,1,KH,KW)
    y = jax.lax.conv_general_dilated(
        x_nchw, w_dw, window_strides=stride,
        padding=[(padding[0], padding[0]), (padding[1], padding[1])],
        rhs_dilation=dilation, feature_group_count=C_in,
        dimension_numbers=("NCHW", "OIHW", "NCHW"))
    y = y + dw_b[None, :, None, None]
    w_pw = jnp.transpose(pw_w, (1, 0))[:, :, None, None]         # (C_out,C_in,1,1)
    z = jax.lax.conv_general_dilated(
        y, w_pw, window_strides=(1, 1), padding=[(0, 0), (0, 0)],
        dimension_numbers=("NCHW", "OIHW", "NCHW"))
    return z + pw_b[None, :, None, None]


if __name__ == "__main__":
    B, C_in, C_out = 2, 4, 8
    H = W = 16
    KH = KW = 3
    stride = (1, 1)
    padding = (1, 1)
    dilation = (1, 1)

    key = jax.random.PRNGKey(0)
    kx, kp = jax.random.split(key)
    x = jax.random.normal(kx, (B, C_in, H, W), jnp.float32)
    dw_w, dw_b, pw_w, pw_b = _init_params(kp, C_in, C_out, KH, KW)

    fwd = jax.jit(functools.partial(depthwise_separable_conv2d,
                                    stride=stride, padding=padding,
                                    dilation=dilation))
    out = jax.block_until_ready(fwd(x, dw_w, dw_b, pw_w, pw_b))

    ref = _reference(x, dw_w, dw_b, pw_w, pw_b, stride, padding, dilation)
    assert out.shape == ref.shape == (B, C_out, H, W)
    # bf16 MXU operands (f32 accumulation) -> slightly looser tolerance vs f32 ref.
    err = float(jnp.max(jnp.abs(out - ref)))
    assert jnp.allclose(out, ref, rtol=5e-2, atol=5e-2), f"max abs err {err}"

    print("KERNEL_OK")
</pallas_src>

<mosaic_0001>
module attributes {stable_mosaic.version = 11 : i64} {
  func.func @_dsconv_folded_kernel(%arg0: i32, %arg1: i32, %arg2: memref<1x18x18x128xf32, #tpu.memory_space<vmem>>, %arg3: memref<9x128x128xbf16, #tpu.memory_space<vmem>>, %arg4: memref<1x128xf32, #tpu.memory_space<vmem>>, %arg5: memref<1x16x16x128xf32, #tpu.memory_space<vmem>>) attributes {dimension_semantics = [#tpu.dimension_semantics<parallel>, #tpu.dimension_semantics<parallel>], iteration_bounds = array<i64: 2, 1>, scalar_prefetch = 0 : i64, scratch_operands = 0 : i64, tpu.core_type = #tpu.core_type<tc>, window_params = [{transform_indices = @transform_0, window_bounds = array<i64: 1, 18, 18, 128>}, {pipeline_mode = #tpu.pipeline_mode<synchronous>, transform_indices = @transform_1, window_bounds = array<i64: 9, 128, 128>}, {pipeline_mode = #tpu.pipeline_mode<synchronous>, transform_indices = @transform_2, window_bounds = array<i64: 1, 128>}, {transform_indices = @transform_3, window_bounds = array<i64: 1, 16, 16, 128>}]} {
    %c0 = arith.constant 0 : index
    %c0_0 = arith.constant 0 : index
    %c0_1 = arith.constant 0 : index
    %c0_2 = arith.constant 0 : index
    %0 = vector.load %arg2[%c0, %c0_0, %c0_1, %c0_2] : memref<1x18x18x128xf32, #tpu.memory_space<vmem>>, vector<1x16x16x128xf32>
    %1 = vector.shape_cast %0 : vector<1x16x16x128xf32> to vector<16x16x128xf32>
    %2 = vector.shape_cast %1 : vector<16x16x128xf32> to vector<256x128xf32>
    %3 = arith.truncf %2 : vector<256x128xf32> to vector<256x128xbf16>
    %c0_3 = arith.constant 0 : index
    %c0_4 = arith.constant 0 : index
    %c0_5 = arith.constant 0 : index
    %4 = vector.load %arg3[%c0_3, %c0_4, %c0_5] : memref<9x128x128xbf16, #tpu.memory_space<vmem>>, vector<1x128x128xbf16>
    %5 = vector.shape_cast %4 : vector<1x128x128xbf16> to vector<128x128xbf16>
    %cst = arith.constant dense<0.000000e+00> : vector<256x128xf32>
    %6 = tpu.matmul %3, %5, %cst {dimension_numbers = #tpu.dot_dimension_numbers<[1], [0], [0], [1], [0, 0, 1, 1], [], []>} : vector<256x128xbf16>, vector<128x128xbf16>, vector<256x128xf32> -> vector<256x128xf32>
    %c0_6 = arith.constant 0 : index
    %c0_7 = arith.constant 0 : index
    %c1 = arith.constant 1 : index
    %c0_8 = arith.constant 0 : index
    %7 = vector.load %arg2[%c0_6, %c0_7, %c1, %c0_8] : memref<1x18x18x128xf32, #tpu.memory_space<vmem>>, vector<1x16x16x128xf32>
    %8 = vector.shape_cast %7 : vector<1x16x16x128xf32> to vector<16x16x128xf32>
    %9 = vector.shape_cast %8 : vector<16x16x128xf32> to vector<256x128xf32>
    %10 = arith.truncf %9 : vector<256x128xf32> to vector<256x128xbf16>
    %c1_9 = arith.constant 1 : index
    %c0_10 = arith.constant 0 : index
    %c0_11 = arith.constant 0 : index
    %11 = vector.load %arg3[%c1_9, %c0_10, %c0_11] : memref<9x128x128xbf16, #tpu.memory_space<vmem>>, vector<1x128x128xbf16>
    %12 = vector.shape_cast %11 : vector<1x128x128xbf16> to vector<128x128xbf16>
    %cst_12 = arith.constant dense<0.000000e+00> : vector<256x128xf32>
    %13 = tpu.matmul %10, %12, %cst_12 {dimension_numbers = #tpu.dot_dimension_numbers<[1], [0], [0], [1], [0, 0, 1, 1], [], []>} : vector<256x128xbf16>, vector<128x128xbf16>, vector<256x128xf32> -> vector<256x128xf32>
    %14 = arith.addf %6, %13 : vector<256x128xf32>
    %c0_13 = arith.constant 0 : index
    %c0_14 = arith.constant 0 : index
    %c2 = arith.constant 2 : index
    %c0_15 = arith.constant 0 : index
    %15 = vector.load %arg2[%c0_13, %c0_14, %c2, %c0_15] : memref<1x18x18x128xf32, #tpu.memory_space<vmem>>, vector<1x16x16x128xf32>
    %16 = vector.shape_cast %15 : vector<1x16x16x128xf32> to vector<16x16x128xf32>
    %17 = vector.shape_cast %16 : vector<16x16x128xf32> to vector<256x128xf32>
    %18 = arith.truncf %17 : vector<256x128xf32> to vector<256x128xbf16>
    %c2_16 = arith.constant 2 : index
    %c0_17 = arith.constant 0 : index
    %c0_18 = arith.constant 0 : index
    %19 = vector.load %arg3[%c2_16, %c0_17, %c0_18] : memref<9x128x128xbf16, #tpu.memory_space<vmem>>, vector<1x128x128xbf16>
    %20 = vector.shape_cast %19 : vector<1x128x128xbf16> to vector<128x128xbf16>
    %cst_19 = arith.constant dense<0.000000e+00> : vector<256x128xf32>
    %21 = tpu.matmul %18, %20, %cst_19 {dimension_numbers = #tpu.dot_dimension_numbers<[1], [0], [0], [1], [0, 0, 1, 1], [], []>} : vector<256x128xbf16>, vector<128x128xbf16>, vector<256x128xf32> -> vector<256x128xf32>
    %22 = arith.addf %14, %21 : vector<256x128xf32>
    %c0_20 = arith.constant 0 : index
    %c1_21 = arith.constant 1 : index
    %c0_22 = arith.constant 0 : index
    %c0_23 = arith.constant 0 : index
    %23 = vector.load %arg2[%c0_20, %c1_21, %c0_22, %c0_23] : memref<1x18x18x128xf32, #tpu.memory_space<vmem>>, vector<1x16x16x128xf32>
    %24 = vector.shape_cast %23 : vector<1x16x16x128xf32> to vector<16x16x128xf32>
    %25 = vector.shape_cast %24 : vector<16x16x128xf32> to vector<256x128xf32>
    %26 = arith.truncf %25 : vector<256x128xf32> to vector<256x128xbf16>
    %c3 = arith.constant 3 : index
    %c0_24 = arith.constant 0 : index
    %c0_25 = arith.constant 0 : index
    %27 = vector.load %arg3[%c3, %c0_24, %c0_25] : memref<9x128x128xbf16, #tpu.memory_space<vmem>>, vector<1x128x128xbf16>
    %28 = vector.shape_cast %27 : vector<1x128x128xbf16> to vector<128x128xbf16>
    %cst_26 = arith.constant dense<0.000000e+00> : vector<256x128xf32>
    %29 = tpu.matmul %26, %28, %cst_26 {dimension_numbers = #tpu.dot_dimension_numbers<[1], [0], [0], [1], [0, 0, 1, 1], [], []>} : vector<256x128xbf16>, vector<128x128xbf16>, vector<256x128xf32> -> vector<256x128xf32>
    %30 = arith.addf %22, %29 : vector<256x128xf32>
    %c0_27 = arith.constant 0 : index
    %c1_28 = arith.constant 1 : index
    %c1_29 = arith.constant 1 : index
    %c0_30 = arith.constant 0 : index
    %31 = vector.load %arg2[%c0_27, %c1_28, %c1_29, %c0_30] : memref<1x18x18x128xf32, #tpu.memory_space<vmem>>, vector<1x16x16x128xf32>
    %32 = vector.shape_cast %31 : vector<1x16x16x128xf32> to vector<16x16x128xf32>
    %33 = vector.shape_cast %32 : vector<16x16x128xf32> to vector<256x128xf32>
    %34 = arith.truncf %33 : vector<256x128xf32> to vector<256x128xbf16>
    %c4 = arith.constant 4 : index
    %c0_31 = arith.constant 0 : index
    %c0_32 = arith.constant 0 : index
    %35 = vector.load %arg3[%c4, %c0_31, %c0_32] : memref<9x128x128xbf16, #tpu.memory_space<vmem>>, vector<1x128x128xbf16>
    %36 = vector.shape_cast %35 : vector<1x128x128xbf16> to vector<128x128xbf16>
    %cst_33 = arith.constant dense<0.000000e+00> : vector<256x128xf32>
    %37 = tpu.matmul %34, %36, %cst_33 {dimension_numbers = #tpu.dot_dimension_numbers<[1], [0], [0], [1], [0, 0, 1, 1], [], []>} : vector<256x128xbf16>, vector<128x128xbf16>, vector<256x128xf32> -> vector<256x128xf32>
    %38 = arith.addf %30, %37 : vector<256x128xf32>
    %c0_34 = arith.constant 0 : index
    %c1_35 = arith.constant 1 : index
    %c2_36 = arith.constant 2 : index
    %c0_37 = arith.constant 0 : index
    %39 = vector.load %arg2[%c0_34, %c1_35, %c2_36, %c0_37] : memref<1x18x18x128xf32, #tpu.memory_space<vmem>>, vector<1x16x16x128xf32>
    %40 = vector.shape_cast %39 : vector<1x16x16x128xf32> to vector<16x16x128xf32>
    %41 = vector.shape_cast %40 : vector<16x16x128xf32> to vector<256x128xf32>
    %42 = arith.truncf %41 : vector<256x128xf32> to vector<256x128xbf16>
    %c5 = arith.constant 5 : index
    %c0_38 = arith.constant 0 : index
    %c0_39 = arith.constant 0 : index
    %43 = vector.load %arg3[%c5, %c0_38, %c0_39] : memref<9x128x128xbf16, #tpu.memory_space<vmem>>, vector<1x128x128xbf16>
    %44 = vector.shape_cast %43 : vector<1x128x128xbf16> to vector<128x128xbf16>
    %cst_40 = arith.constant dense<0.000000e+00> : vector<256x128xf32>
    %45 = tpu.matmul %42, %44, %cst_40 {dimension_numbers = #tpu.dot_dimension_numbers<[1], [0], [0], [1], [0, 0, 1, 1], [], []>} : vector<256x128xbf16>, vector<128x128xbf16>, vector<256x128xf32> -> vector<256x128xf32>
    %46 = arith.addf %38, %45 : vector<256x128xf32>
    %c0_41 = arith.constant 0 : index
    %c2_42 = arith.constant 2 : index
    %c0_43 = arith.constant 0 : index
    %c0_44 = arith.constant 0 : index
    %47 = vector.load %arg2[%c0_41, %c2_42, %c0_43, %c0_44] : memref<1x18x18x128xf32, #tpu.memory_space<vmem>>, vector<1x16x16x128xf32>
    %48 = vector.shape_cast %47 : vector<1x16x16x128xf32> to vector<16x16x128xf32>
    %49 = vector.shape_cast %48 : vector<16x16x128xf32> to vector<256x128xf32>
    %50 = arith.truncf %49 : vector<256x128xf32> to vector<256x128xbf16>
    %c6 = arith.constant 6 : index
    %c0_45 = arith.constant 0 : index
    %c0_46 = arith.constant 0 : index
    %51 = vector.load %arg3[%c6, %c0_45, %c0_46] : memref<9x128x128xbf16, #tpu.memory_space<vmem>>, vector<1x128x128xbf16>
    %52 = vector.shape_cast %51 : vector<1x128x128xbf16> to vector<128x128xbf16>
    %cst_47 = arith.constant dense<0.000000e+00> : vector<256x128xf32>
    %53 = tpu.matmul %50, %52, %cst_47 {dimension_numbers = #tpu.dot_dimension_numbers<[1], [0], [0], [1], [0, 0, 1, 1], [], []>} : vector<256x128xbf16>, vector<128x128xbf16>, vector<256x128xf32> -> vector<256x128xf32>
    %54 = arith.addf %46, %53 : vector<256x128xf32>
    %c0_48 = arith.constant 0 : index
    %c2_49 = arith.constant 2 : index
    %c1_50 = arith.constant 1 : index
    %c0_51 = arith.constant 0 : index
    %55 = vector.load %arg2[%c0_48, %c2_49, %c1_50, %c0_51] : memref<1x18x18x128xf32, #tpu.memory_space<vmem>>, vector<1x16x16x128xf32>
    %56 = vector.shape_cast %55 : vector<1x16x16x128xf32> to vector<16x16x128xf32>
    %57 = vector.shape_cast %56 : vector<16x16x128xf32> to vector<256x128xf32>
    %58 = arith.truncf %57 : vector<256x128xf32> to vector<256x128xbf16>
    %c7 = arith.constant 7 : index
    %c0_52 = arith.constant 0 : index
    %c0_53 = arith.constant 0 : index
    %59 = vector.load %arg3[%c7, %c0_52, %c0_53] : memref<9x128x128xbf16, #tpu.memory_space<vmem>>, vector<1x128x128xbf16>
    %60 = vector.shape_cast %59 : vector<1x128x128xbf16> to vector<128x128xbf16>
    %cst_54 = arith.constant dense<0.000000e+00> : vector<256x128xf32>
    %61 = tpu.matmul %58, %60, %cst_54 {dimension_numbers = #tpu.dot_dimension_numbers<[1], [0], [0], [1], [0, 0, 1, 1], [], []>} : vector<256x128xbf16>, vector<128x128xbf16>, vector<256x128xf32> -> vector<256x128xf32>
    %62 = arith.addf %54, %61 : vector<256x128xf32>
    %c0_55 = arith.constant 0 : index
    %c2_56 = arith.constant 2 : index
    %c2_57 = arith.constant 2 : index
    %c0_58 = arith.constant 0 : index
    %63 = vector.load %arg2[%c0_55, %c2_56, %c2_57, %c0_58] : memref<1x18x18x128xf32, #tpu.memory_space<vmem>>, vector<1x16x16x128xf32>
    %64 = vector.shape_cast %63 : vector<1x16x16x128xf32> to vector<16x16x128xf32>
    %65 = vector.shape_cast %64 : vector<16x16x128xf32> to vector<256x128xf32>
    %66 = arith.truncf %65 : vector<256x128xf32> to vector<256x128xbf16>
    %c8 = arith.constant 8 : index
    %c0_59 = arith.constant 0 : index
    %c0_60 = arith.constant 0 : index
    %67 = vector.load %arg3[%c8, %c0_59, %c0_60] : memref<9x128x128xbf16, #tpu.memory_space<vmem>>, vector<1x128x128xbf16>
    %68 = vector.shape_cast %67 : vector<1x128x128xbf16> to vector<128x128xbf16>
    %cst_61 = arith.constant dense<0.000000e+00> : vector<256x128xf32>
    %69 = tpu.matmul %66, %68, %cst_61 {dimension_numbers = #tpu.dot_dimension_numbers<[1], [0], [0], [1], [0, 0, 1, 1], [], []>} : vector<256x128xbf16>, vector<128x128xbf16>, vector<256x128xf32> -> vector<256x128xf32>
    %70 = arith.addf %62, %69 : vector<256x128xf32>
    %c0_62 = arith.constant 0 : index
    %c0_63 = arith.constant 0 : index
    %71 = vector.load %arg4[%c0_62, %c0_63] : memref<1x128xf32, #tpu.memory_space<vmem>>, vector<1x128xf32>
    %72 = vector.broadcast %71 : vector<1x128xf32> to vector<256x128xf32>
    %73 = arith.addf %70, %72 : vector<256x128xf32>
    %74 = vector.shape_cast %73 : vector<256x128xf32> to vector<1x16x16x128xf32>
    %c0_64 = arith.constant 0 : index
    %c0_65 = arith.constant 0 : index
    %c0_66 = arith.constant 0 : index
    %c0_67 = arith.constant 0 : index
    %75 = vector.load %arg5[%c0_64, %c0_65, %c0_66, %c0_67] : memref<1x16x16x128xf32, #tpu.memory_space<vmem>>, vector<1x16x16x128xf32>
    tpu.vector_store %arg5[%c0_64, %c0_65, %c0_66, %c0_67], %74 {strides = array<i32>} : memref<1x16x16x128xf32, #tpu.memory_space<vmem>>, vector<1x16x16x128xf32>,
    return
  }
  func.func @transform_0(%arg0: i32, %arg1: i32) -> (i32, i32, i32, i32) {
    %c0_i32 = arith.constant 0 : i32
    %c0_i32_0 = arith.constant 0 : i32
    %c0_i32_1 = arith.constant 0 : i32
    %c0_i32_2 = arith.constant 0 : i32
    return %arg0, %c0_i32, %c0_i32_0, %c0_i32_1 : i32, i32, i32, i32
  }
  func.func @transform_1(%arg0: i32, %arg1: i32) -> (i32, i32, i32) {
    %c0_i32 = arith.constant 0 : i32
    %c0_i32_0 = arith.constant 0 : i32
    %c0_i32_1 = arith.constant 0 : i32
    %c0_i32_2 = arith.constant 0 : i32
    return %c0_i32, %c0_i32_0, %c0_i32_1 : i32, i32, i32
  }
  func.func @transform_2(%arg0: i32, %arg1: i32) -> (i32, i32) {
    %c0_i32 = arith.constant 0 : i32
    %c0_i32_0 = arith.constant 0 : i32
    %c0_i32_1 = arith.constant 0 : i32
    return %c0_i32, %c0_i32_0 : i32, i32
  }
  func.func @transform_3(%arg0: i32, %arg1: i32) -> (i32, i32, i32, i32) {
    %c0_i32 = arith.constant 0 : i32
    %c0_i32_0 = arith.constant 0 : i32
    %c0_i32_1 = arith.constant 0 : i32
    return %arg0, %arg1, %c0_i32, %c0_i32_0 : i32, i32, i32, i32
  }
}

</mosaic_0001>

<llo_original>
// kernel: depthwise_separable_conv2d.1
$region0: #{depthwise_separable_conv2d.1}
  #allocation0 [shape = 'u32[]', space=smem, size = 0x4, offset = 0x4, fixed_abs, tag = 'smem constant byte address 0x4 - core index']
  #allocation1 [shape = 'u32[72,128]{1,0:T(1,128)}', space=vmem, size = 0x9000, scoped, tag = 'internal scratch']
  %s0 = inlined_call_operand.vmem [shape: f32[2,18,18,128], index: 0, kind: input, shape index: {}]
  %s1 = inlined_call_operand.vmem [shape: bf16[9,128,128], index: 1, kind: input, shape index: {}]
  %s2 = inlined_call_operand.vmem [shape: f32[1,128], index: 2, kind: input, shape index: {}]
  %s3 = inlined_call_operand.vmem [shape: f32[2,16,16,128], index: 3, kind: output, shape index: {}]
  %s4 = sld [smem:[#allocation0]]
  $region45: #{depthwise_separable_conv2d.1} parent=0
    _
  %s6 = ssub.s32 1, %s4
  %s7 = scalar_select 0, %s6, %s4
  loop: start=0, step=1, limit=4
  $region2: #{depthwise_separable_conv2d.1} parent=0 // loop_pre_header
    _
  $region3: #{depthwise_separable_conv2d.1} parent=0 // loop_header
    %s9 = sphi 0, %s13
    %p10 = scmp.ge.s32.totalorder %s9, 4
    %s16 = sphi 0, %s28
    %s17 = sphi 0, %s24
    %s18 = sphi 0, %s16
    %s19 = sphi 0, %s17
    %s20 = sphi 0, %s18
    %s21 = sphi 0, %s19
    %s31 = sphi 0, %s33
    %s34 = sphi 0, %s31
    %s35 = sphi 0, %s34
    %s51 = sphi 0, %s35
    %s55 = sphi 0, %s55
    %s57 = sphi 0, %s55
    %s58 = sphi 0, %s57
    %s72 = sphi 0, %s58
    %s76 = sphi 0, %s76
    %s78 = sphi 0, %s76
    %s79 = sphi 0, %s78
    %s93 = sphi 0, %s79
    %s101 = sphi 0, %s103
    %s104 = sphi 0, %s101
    %s105 = sphi 0, %s104
    %s121 = sphi 0, %s105
  $region4: #{depthwise_separable_conv2d.1} parent=0 // loop_header_branch
    %12 = sbr.rel (%p10) target = $region8
  $region5: #{depthwise_separable_conv2d.1} parent=0 // loop_body
    %s14 = ssub.s32 %s9, 1
    %s15 = ssub.s32 %s9, 2
    %s22 = sadd.s32 1, %s17
    %p23 = scmp.ge.s32.totalorder %s22, 1
    %s24 = scalar_select %p23, 0, %s22
    %s25 = sadd.s32 1, %s16
    %s26 = scalar_select %p23, %s25, %s16
    %p27 = scmp.ge.s32.totalorder %s26, 2
    %s28 = scalar_select %p27, 0, %s26
    %s29 = ssub.s32 %s16, %s28
    %p30 = scmp.eq.s32.totalorder %s29, 0
    %s32 = sadd.s32 %s31, 1
    %s33 = scalar_select %p30, %s31, %s32
    %p36 = pneg %p30
    %p37 = scmp.eq.s32.totalorder %s9, 1
    %p38 = por %p36, %p37
    %p39 = scmp.ne.s32.totalorder %s31, %s34
    %p40 = scmp.eq.s32.totalorder %s9, 0
    %p41 = por %p39, %p40
    %p42 = scmp.ne.s32.totalorder %s31, %s34
    %p43 = scmp.eq.s32.totalorder %s14, 1
    %p44 = por %p42, %p43
    %p45 = scmp.ne.s32.totalorder %s34, %s35
    %p46 = scmp.eq.s32.totalorder %s14, 0
    %p47 = por %p45, %p46
    %p48 = scmp.ne.s32.totalorder %s34, %s35
    %p49 = scmp.eq.s32.totalorder %s15, 1
    %p50 = por %p48, %p49
    %p52 = scmp.ne.s32.totalorder %s35, %s51
    %p53 = scmp.eq.s32.totalorder %s15, 0
    %p54 = por %p52, %p53
    %s56 = sadd.s32 %s55, 1
    %p59 = scmp.eq.s32.totalorder %s9, 1
    %p60 = scmp.ne.s32.totalorder %s55, %s57
    %p61 = scmp.eq.s32.totalorder %s9, 0
    %p62 = por %p60, %p61
    %p63 = scmp.ne.s32.totalorder %s55, %s57
    %p64 = scmp.eq.s32.totalorder %s14, 1
    %p65 = por %p63, %p64
    %p66 = scmp.ne.s32.totalorder %s57, %s58
    %p67 = scmp.eq.s32.totalorder %s14, 0
    %p68 = por %p66, %p67
    %p69 = scmp.ne.s32.totalorder %s57, %s58
    %p70 = scmp.eq.s32.totalorder %s15, 1
    %p71 = por %p69, %p70
    %p73 = scmp.ne.s32.totalorder %s58, %s72
    %p74 = scmp.eq.s32.totalorder %s15, 0
    %p75 = por %p73, %p74
    %s77 = sadd.s32 %s76, 1
    %p80 = scmp.eq.s32.totalorder %s9, 1
    %p81 = scmp.ne.s32.totalorder %s76, %s78
    %p82 = scmp.eq.s32.totalorder %s9, 0
    %p83 = por %p81, %p82
    %p84 = scmp.ne.s32.totalorder %s76, %s78
    %p85 = scmp.eq.s32.totalorder %s14, 1
    %p86 = por %p84, %p85
    %p87 = scmp.ne.s32.totalorder %s78, %s79
    %p88 = scmp.eq.s32.totalorder %s14, 0
    %p89 = por %p87, %p88
    %p90 = scmp.ne.s32.totalorder %s78, %s79
    %p91 = scmp.eq.s32.totalorder %s15, 1
    %p92 = por %p90, %p91
    %p94 = scmp.ne.s32.totalorder %s79, %s93
    %p95 = scmp.eq.s32.totalorder %s15, 0
    %p96 = por %p94, %p95
    %s97 = ssub.s32 %s16, %s28
    %s98 = ssub.s32 %s17, %s24
    %s99 = sor.u32 %s97, %s98
    %p100 = scmp.eq.s32.totalorder %s99, 0
    %s102 = sadd.s32 %s101, 1
    %s103 = scalar_select %p100, %s101, %s102
    %p106 = pneg %p100
    %p107 = scmp.eq.s32.totalorder %s9, 1
    %p108 = por %p106, %p107
    %p109 = scmp.ne.s32.totalorder %s101, %s104
    %p110 = scmp.eq.s32.totalorder %s9, 0
    %p111 = por %p109, %p110
    %p112 = scmp.ne.s32.totalorder %s101, %s104
    %p113 = scmp.eq.s32.totalorder %s14, 1
    %p114 = por %p112, %p113
    %p115 = scmp.ne.s32.totalorder %s104, %s105
    %p116 = scmp.eq.s32.totalorder %s14, 0
    %p117 = por %p115, %p116
    %p118 = scmp.ne.s32.totalorder %s104, %s105
    %p119 = scmp.eq.s32.totalorder %s15, 1
    %p120 = por %p118, %p119
    %p122 = scmp.ne.s32.totalorder %s105, %s121
    %p123 = scmp.eq.s32.totalorder %s15, 0
    %p124 = por %p122, %p123
    %p125 = scmp.le.s32.totalorder 1, %s9
    %p126 = scmp.lt.s32.totalorder %s9, 3
    %p127 = pnand %p125, %p126
    %p128 = pneg %p127
    // Predicated region
    $region9: #{depthwise_separable_conv2d.1} parent=5 // pred_check
      _
    $region10: #{depthwise_separable_conv2d.1} parent=5 // pred_check_branch
      %130 = sbr.rel (%p127) target = $region12
    $region11: #{depthwise_separable_conv2d.1} parent=5 // pred_region
      %s131 = ssub.s32 %s9, 1
      // Predicated region
      $region13: #{depthwise_separable_conv2d.1} parent=11 // pred_check
        %p132 = pneg %p68
      $region14: #{depthwise_separable_conv2d.1} parent=11 // pred_check_branch
        %134 = sbr.rel (%p132) target = $region16
      $region15: #{depthwise_separable_conv2d.1} parent=11 // pred_region
        _
      $region16: #{depthwise_separable_conv2d.1} parent=11 // pred_fallthru
        _
      // Predicated region
      $region17: #{depthwise_separable_conv2d.1} parent=11 // pred_check
        %p135 = pneg %p89
      $region18: #{depthwise_separable_conv2d.1} parent=11 // pred_check_branch
        %137 = sbr.rel (%p135) target = $region20
      $region19: #{depthwise_separable_conv2d.1} parent=11 // pred_region
        _
      $region20: #{depthwise_separable_conv2d.1} parent=11 // pred_fallthru
        _
    $region12: #{depthwise_separable_conv2d.1} parent=5 // pred_fallthru
      _
    %p138 = scmp.lt.s32.totalorder %s9, 2
    // Predicated region
    $region21: #{depthwise_separable_conv2d.1} parent=5 // pred_check
      %p139 = pneg %p138
    $region22: #{depthwise_separable_conv2d.1} parent=5 // pred_check_branch
      %141 = sbr.rel (%p139) target = $region24
    $region23: #{depthwise_separable_conv2d.1} parent=5 // pred_region
      // Predicated region
      $region25: #{depthwise_separable_conv2d.1} parent=23 // pred_check
        %p142 = pneg %p41
      $region26: #{depthwise_separable_conv2d.1} parent=23 // pred_check_branch
        %144 = sbr.rel (%p142) target = $region28
      $region27: #{depthwise_separable_conv2d.1} parent=23 // pred_region
        %p145 = scmp.lt.s32.totalorder %s16, 1
        %s146 = scalar_select %p145, %s16, 1
        %s147 = smul.addr %s146, 54
        %s148 = smul.addr %s147, 8
        %s149 = scalar_lea.vmem %s0, %s148
      $region28: #{depthwise_separable_conv2d.1} parent=23 // pred_fallthru
        _
    $region24: #{depthwise_separable_conv2d.1} parent=5 // pred_fallthru
      _
    %p150 = scmp.le.s32.totalorder 1, %s9
    %p151 = scmp.lt.s32.totalorder %s9, 3
    %p152 = pnand %p150, %p151
    %p153 = pneg %p152
    // Predicated region
    $region29: #{depthwise_separable_conv2d.1} parent=5 // pred_check
      _
    $region30: #{depthwise_separable_conv2d.1} parent=5 // pred_check_branch
      %155 = sbr.rel (%p152) target = $region32
    $region31: #{depthwise_separable_conv2d.1} parent=5 // pred_region
      %s156 = ssub.s32 %s9, 1
      %p157 = scmp.lt.s32.totalorder %s18, 1
      %s158 = scalar_select %p157, %s18, 1
      %s159 = smul.addr %s158, 54
      %s160 = smul.addr %s159, 8
      %s161 = scalar_lea.vmem %s0, %s160
      %p162 = pneg %p47
      %p163 = pneg %p44
      %p164 = pneg %p68
      %p165 = pneg %p65
      %p166 = pneg %p89
      %p167 = pneg %p86
      %p168 = pneg %p117
      %p169 = pneg %p114
      %s170 = smul.u32 16, %s19
      %p171 = scmp.lt.s32.totalorder %s18, 1
      %s172 = scalar_select %p171, %s18, 1
      %p173 = scmp.lt.s32.totalorder %s170, 15
      %s174 = scalar_select %p173, %s170, 15
      %s175 = smul.addr %s174, 2
      %s176 = smul.addr %s172, 32
      %s177 = sadd.s32 %s175, %s176
      %s178 = smul.addr %s177, 8
      %s179 = scalar_lea.vmem %s3, %s178
      %p180 = scmp.lt.s32.totalorder %s18, 1
      %s181 = scalar_select %p180, %s18, 1
      %s182 = smul.addr %s181, 54
      %s183 = smul.addr %s182, 8
      %s184 = scalar_lea.vmem %s0, %s183
      %s185 = smul.u32 16, %s19
      %p186 = scmp.lt.s32.totalorder %s18, 1
      %s187 = scalar_select %p186, %s18, 1
      %p188 = scmp.lt.s32.totalorder %s185, 15
      %s189 = scalar_select %p188, %s185, 15
      %s190 = smul.addr %s189, 2
      %s191 = smul.addr %s187, 32
      %s192 = sadd.s32 %s190, %s191
      %s193 = smul.addr %s192, 8
      %s194 = scalar_lea.vmem %s3, %s193
      %s195 = smul.u32 16, %s19
      %v196 = vld [vmem:[%s184] sm:$0xff]
      %v197 = vld [vmem:[%s184 + $0x8] sm:$0xff]
      %v198 = vld [vmem:[%s184 + $0x18] sm:$0xff]
      %v199 = vld [vmem:[%s184 + $0x20] sm:$0xff]
      %v200 = vld [vmem:[%s184 + $0x30] sm:$0xff]
      %v201 = vld [vmem:[%s184 + $0x38] sm:$0xff]
      %v202 = vld [vmem:[%s184 + $0x48] sm:$0xff]
      %v203 = vld [vmem:[%s184 + $0x50] sm:$0xff]
      %v204 = vld [vmem:[%s184 + $0x60] sm:$0xff]
      %v205 = vld [vmem:[%s184 + $0x68] sm:$0xff]
      %v206 = vld [vmem:[%s184 + $0x78] sm:$0xff]
      %v207 = vld [vmem:[%s184 + $0x80] sm:$0xff]
      %v208 = vld [vmem:[%s184 + $0x90] sm:$0xff]
      %v209 = vld [vmem:[%s184 + $0x98] sm:$0xff]
      %v210 = vld [vmem:[%s184 + $0xa8] sm:$0xff]
      %v211 = vld [vmem:[%s184 + $0xb0] sm:$0xff]
      %v212 = vld [vmem:[%s184 + $0xc0] sm:$0xff]
      %v213 = vld [vmem:[%s184 + $0xc8] sm:$0xff]
      %v214 = vld [vmem:[%s184 + $0xd8] sm:$0xff]
      %v215 = vld [vmem:[%s184 + $0xe0] sm:$0xff]
      %v216 = vld [vmem:[%s184 + $0xf0] sm:$0xff]
      %v217 = vld [vmem:[%s184 + $0xf8] sm:$0xff]
      %v218 = vld [vmem:[%s184 + $0x108] sm:$0xff]
      %v219 = vld [vmem:[%s184 + $0x110] sm:$0xff]
      %v220 = vld [vmem:[%s184 + $0x120] sm:$0xff]
      %v221 = vld [vmem:[%s184 + $0x128] sm:$0xff]
      %v222 = vld [vmem:[%s184 + $0x138] sm:$0xff]
      %v223 = vld [vmem:[%s184 + $0x140] sm:$0xff]
      %v224 = vld [vmem:[%s184 + $0x150] sm:$0xff]
      %v225 = vld [vmem:[%s184 + $0x158] sm:$0xff]
      %v226 = vld [vmem:[%s184 + $0x168] sm:$0xff]
      %v227 = vld [vmem:[%s184 + $0x170] sm:$0xff]
      %v228 = vpack.c.bf16 %v197, %v196
      %v229 = vpack.c.bf16 %v199, %v198
      %v230 = vpack.c.bf16 %v201, %v200
      %v231 = vpack.c.bf16 %v203, %v202
      %v232 = vpack.c.bf16 %v205, %v204
      %v233 = vpack.c.bf16 %v207, %v206
      %v234 = vpack.c.bf16 %v209, %v208
      %v235 = vpack.c.bf16 %v211, %v210
      %v236 = vpack.c.bf16 %v213, %v212
      %v237 = vpack.c.bf16 %v215, %v214
      %v238 = vpack.c.bf16 %v217, %v216
      %v239 = vpack.c.bf16 %v219, %v218
      %v240 = vpack.c.bf16 %v221, %v220
      %v241 = vpack.c.bf16 %v223, %v222
      %v242 = vpack.c.bf16 %v225, %v224
      %v243 = vpack.c.bf16 %v227, %v226
      %v244 = vld [vmem:[%s1] sm:$0xf]
      %v245 = vld [vmem:[%s1 + $0x4] sm:$0xf]
      %v246 = vld [vmem:[%s1 + $0x8] sm:$0xf]
      %v247 = vld [vmem:[%s1 + $0xc] sm:$0xf]
      %v248 = vld [vmem:[%s1 + $0x10] sm:$0xf]
      %v249 = vld [vmem:[%s1 + $0x14] sm:$0xf]
      %v250 = vld [vmem:[%s1 + $0x18] sm:$0xf]
      %v251 = vld [vmem:[%s1 + $0x1c] sm:$0xf]
      %v252 = vld [vmem:[%s1 + $0x20] sm:$0xf]
      %v253 = vld [vmem:[%s1 + $0x24] sm:$0xf]
      %v254 = vld [vmem:[%s1 + $0x28] sm:$0xf]
      %v255 = vld [vmem:[%s1 + $0x2c] sm:$0xf]
      %v256 = vld [vmem:[%s1 + $0x30] sm:$0xf]
      %v257 = vld [vmem:[%s1 + $0x34] sm:$0xf]
      %v258 = vld [vmem:[%s1 + $0x38] sm:$0xf]
      %v259 = vld [vmem:[%s1 + $0x3c] sm:$0xf]
      %v260 = vld [vmem:[%s184 + $0x1] sm:$0xff]
      %v261 = vld [vmem:[%s184 + $0x9] sm:$0xff]
      %v262 = vld [vmem:[%s184 + $0x19] sm:$0xff]
      %v263 = vld [vmem:[%s184 + $0x21] sm:$0xff]
      %v264 = vld [vmem:[%s184 + $0x31] sm:$0xff]
      %v265 = vld [vmem:[%s184 + $0x39] sm:$0xff]
      %v266 = vld [vmem:[%s184 + $0x49] sm:$0xff]
      %v267 = vld [vmem:[%s184 + $0x51] sm:$0xff]
      %v268 = vld [vmem:[%s184 + $0x61] sm:$0xff]
      %v269 = vld [vmem:[%s184 + $0x69] sm:$0xff]
      %v270 = vld [vmem:[%s184 + $0x79] sm:$0xff]
      %v271 = vld [vmem:[%s184 + $0x81] sm:$0xff]
      %v272 = vld [vmem:[%s184 + $0x91] sm:$0xff]
      %v273 = vld [vmem:[%s184 + $0x99] sm:$0xff]
      %v274 = vld [vmem:[%s184 + $0xa9] sm:$0xff]
      %v275 = vld [vmem:[%s184 + $0xb1] sm:$0xff]
      %v276 = vld [vmem:[%s184 + $0xc1] sm:$0xff]
      %v277 = vld [vmem:[%s184 + $0xc9] sm:$0xff]
      %v278 = vld [vmem:[%s184 + $0xd9] sm:$0xff]
      %v279 = vld [vmem:[%s184 + $0xe1] sm:$0xff]
      %v280 = vld [vmem:[%s184 + $0xf1] sm:$0xff]
      %v281 = vld [vmem:[%s184 + $0xf9] sm:$0xff]
      %v282 = vld [vmem:[%s184 + $0x109] sm:$0xff]
      %v283 = vld [vmem:[%s184 + $0x111] sm:$0xff]
      %v284 = vld [vmem:[%s184 + $0x121] sm:$0xff]
      %v285 = vld [vmem:[%s184 + $0x129] sm:$0xff]
      %v286 = vld [vmem:[%s184 + $0x139] sm:$0xff]
      %v287 = vld [vmem:[%s184 + $0x141] sm:$0xff]
      %v288 = vld [vmem:[%s184 + $0x151] sm:$0xff]
      %v289 = vld [vmem:[%s184 + $0x159] sm:$0xff]
      %v290 = vld [vmem:[%s184 + $0x169] sm:$0xff]
      %v291 = vld [vmem:[%s184 + $0x171] sm:$0xff]
      %v292 = vpack.c.bf16 %v261, %v260
      %v293 = vpack.c.bf16 %v263, %v262
      %v294 = vpack.c.bf16 %v265, %v264
      %v295 = vpack.c.bf16 %v267, %v266
      %v296 = vpack.c.bf16 %v269, %v268
      %v297 = vpack.c.bf16 %v271, %v270
      %v298 = vpack.c.bf16 %v273, %v272
      %v299 = vpack.c.bf16 %v275, %v274
      %v300 = vpack.c.bf16 %v277, %v276
      %v301 = vpack.c.bf16 %v279, %v278
      %v302 = vpack.c.bf16 %v281, %v280
      %v303 = vpack.c.bf16 %v283, %v282
      %v304 = vpack.c.bf16 %v285, %v284
      %v305 = vpack.c.bf16 %v287, %v286
      %v306 = vpack.c.bf16 %v289, %v288
      %v307 = vpack.c.bf16 %v291, %v290
      %s308 = scalar_lea.vmem %s1, 64
      %v309 = vld [vmem:[%s308] sm:$0xf]
      %v310 = vld [vmem:[%s308 + $0x4] sm:$0xf]
      %v311 = vld [vmem:[%s308 + $0x8] sm:$0xf]
      %v312 = vld [vmem:[%s308 + $0xc] sm:$0xf]
      %v313 = vld [vmem:[%s308 + $0x10] sm:$0xf]
      %v314 = vld [vmem:[%s308 + $0x14] sm:$0xf]
      %v315 = vld [vmem:[%s308 + $0x18] sm:$0xf]
      %v316 = vld [vmem:[%s308 + $0x1c] sm:$0xf]
      %v317 = vld [vmem:[%s308 + $0x20] sm:$0xf]
      %v318 = vld [vmem:[%s308 + $0x24] sm:$0xf]
      %v319 = vld [vmem:[%s308 + $0x28] sm:$0xf]
      %v320 = vld [vmem:[%s308 + $0x2c] sm:$0xf]
      %v321 = vld [vmem:[%s308 + $0x30] sm:$0xf]
      %v322 = vld [vmem:[%s308 + $0x34] sm:$0xf]
      %v323 = vld [vmem:[%s308 + $0x38] sm:$0xf]
      %v324 = vld [vmem:[%s308 + $0x3c] sm:$0xf]
      %v341 = vunpack.c.l.b16 %v309
      %v342 = vunpack.c.l.b16 %v310
      %v343 = vunpack.c.l.b16 %v311
      %v344 = vunpack.c.l.b16 %v312
      %v345 = vunpack.c.l.b16 %v313
      %v346 = vunpack.c.l.b16 %v314
      %v347 = vunpack.c.l.b16 %v315
      %v348 = vunpack.c.l.b16 %v316
      %v349 = vunpack.c.l.b16 %v317
      %v350 = vunpack.c.l.b16 %v318
      %v351 = vunpack.c.l.b16 %v319
      %v352 = vunpack.c.l.b16 %v320
      %v353 = vunpack.c.l.b16 %v321
      %v354 = vunpack.c.l.b16 %v322
      %v355 = vunpack.c.l.b16 %v323
      %v356 = vunpack.c.l.b16 %v324
      %v357 = vpack.c.b16 %v342, %v341
      %v358 = vpack.c.b16 %v344, %v343
      %v359 = vpack.c.b16 %v346, %v345
      %v360 = vpack.c.b16 %v348, %v347
      %v361 = vpack.c.b16 %v350, %v349
      %v362 = vpack.c.b16 %v352, %v351
      %v363 = vpack.c.b16 %v354, %v353
      %v364 = vpack.c.b16 %v356, %v355
      %373 = vmatpush.bf16.msra.mxu0 %v364
      %374 = vmatpush.bf16.msra.mxu0 %v363
      %375 = vmatpush.bf16.msra.mxu0 %v362
      %376 = vmatpush.bf16.msra.mxu0 %v361
      %377 = vmatpush.bf16.msra.mxu0 %v360
      %378 = vmatpush.bf16.msra.mxu0 %v359
      %379 = vmatpush.bf16.msra.mxu0 %v358
      %380 = vmatpush.bf16.msra.mxu0 %v357
      %381 = vmatmul.bf16.gmra.mxu0 %v292
      %v382 = vpop.f32.mrf.mxu0
      %v383 = vadd.f32 0.0, %v382
      %v384 = vpop.f32.mrf.mxu0
      %v385 = vadd.f32 0.0, %v384
      %386 = vmatmul.bf16.gmra.mxu0 %v293
      %v387 = vpop.f32.mrf.mxu0
      %v388 = vadd.f32 0.0, %v387
      %v389 = vpop.f32.mrf.mxu0
      %v390 = vadd.f32 0.0, %v389
      %391 = vmatmul.bf16.gmra.mxu0 %v294
      %v392 = vpop.f32.mrf.mxu0
      %v393 = vadd.f32 0.0, %v392
      %v394 = vpop.f32.mrf.mxu0
      %v395 = vadd.f32 0.0, %v394
      %396 = vmatmul.bf16.gmra.mxu0 %v295
      %v397 = vpop.f32.mrf.mxu0
      %v398 = vadd.f32 0.0, %v397
      %v399 = vpop.f32.mrf.mxu0
      %v400 = vadd.f32 0.0, %v399
      %401 = vmatmul.bf16.gmra.mxu0 %v296
      %v402 = vpop.f32.mrf.mxu0
      %v403 = vadd.f32 0.0, %v402
      %v404 = vpop.f32.mrf.mxu0
      %v405 = vadd.f32 0.0, %v404
      %406 = vmatmul.bf16.gmra.mxu0 %v297
      %v407 = vpop.f32.mrf.mxu0
      %v408 = vadd.f32 0.0, %v407
      %v409 = vpop.f32.mrf.mxu0
      %v410 = vadd.f32 0.0, %v409
      %411 = vmatmul.bf16.gmra.mxu0 %v298
      %v412 = vpop.f32.mrf.mxu0
      %v413 = vadd.f32 0.0, %v412
      %v414 = vpop.f32.mrf.mxu0
      %v415 = vadd.f32 0.0, %v414
      %416 = vmatmul.bf16.gmra.mxu0 %v299
      %v417 = vpop.f32.mrf.mxu0
      %v418 = vadd.f32 0.0, %v417
      %v419 = vpop.f32.mrf.mxu0
      %v420 = vadd.f32 0.0, %v419
      %421 = vmatmul.bf16.gmra.mxu0 %v300
      %v422 = vpop.f32.mrf.mxu0
      %v423 = vadd.f32 0.0, %v422
      %v424 = vpop.f32.mrf.mxu0
      %v425 = vadd.f32 0.0, %v424
      %426 = vmatmul.bf16.gmra.mxu0 %v301
      %v427 = vpop.f32.mrf.mxu0
      %v428 = vadd.f32 0.0, %v427
      %v429 = vpop.f32.mrf.mxu0
      %v430 = vadd.f32 0.0, %v429
      %431 = vmatmul.bf16.gmra.mxu0 %v302
      %v432 = vpop.f32.mrf.mxu0
      %v433 = vadd.f32 0.0, %v432
      %v434 = vpop.f32.mrf.mxu0
      %v435 = vadd.f32 0.0, %v434
      %436 = vmatmul.bf16.gmra.mxu0 %v303
      %v437 = vpop.f32.mrf.mxu0
      %v438 = vadd.f32 0.0, %v437
      %v439 = vpop.f32.mrf.mxu0
      %v440 = vadd.f32 0.0, %v439
      %441 = vmatmul.bf16.gmra.mxu0 %v304
      %v442 = vpop.f32.mrf.mxu0
      %v443 = vadd.f32 0.0, %v442
      %v444 = vpop.f32.mrf.mxu0
      %v445 = vadd.f32 0.0, %v444
      %446 = vmatmul.bf16.gmra.mxu0 %v305
      %v447 = vpop.f32.mrf.mxu0
      %v448 = vadd.f32 0.0, %v447
      %v449 = vpop.f32.mrf.mxu0
      %v450 = vadd.f32 0.0, %v449
      %451 = vmatmul.bf16.gmra.mxu0 %v306
      %v452 = vpop.f32.mrf.mxu0
      %v453 = vadd.f32 0.0, %v452
      %v454 = vpop.f32.mrf.mxu0
      %v455 = vadd.f32 0.0, %v454
      %456 = vmatmul.bf16.gmra.mxu0 %v307
      %v457 = vpop.f32.mrf.mxu0
      %v458 = vadd.f32 0.0, %v457
      %v459 = vpop.f32.mrf.mxu0
      %v460 = vadd.f32 0.0, %v459
      %461 = vdwg.mxu0
      %v478 = vunpack.c.l.b16 %v244
      %v479 = vunpack.c.l.b16 %v245
      %v480 = vunpack.c.l.b16 %v246
      %v481 = vunpack.c.l.b16 %v247
      %v482 = vunpack.c.l.b16 %v248
      %v483 = vunpack.c.l.b16 %v249
      %v484 = vunpack.c.l.b16 %v250
      %v485 = vunpack.c.l.b16 %v251
      %v486 = vunpack.c.l.b16 %v252
      %v487 = vunpack.c.l.b16 %v253
      %v488 = vunpack.c.l.b16 %v254
      %v489 = vunpack.c.l.b16 %v255
      %v490 = vunpack.c.l.b16 %v256
      %v491 = vunpack.c.l.b16 %v257
      %v492 = vunpack.c.l.b16 %v258
      %v493 = vunpack.c.l.b16 %v259
      %v494 = vpack.c.b16 %v479, %v478
      %v495 = vpack.c.b16 %v481, %v480
      %v496 = vpack.c.b16 %v483, %v482
      %v497 = vpack.c.b16 %v485, %v484
      %v498 = vpack.c.b16 %v487, %v486
      %v499 = vpack.c.b16 %v489, %v488
      %v500 = vpack.c.b16 %v491, %v490
      %v501 = vpack.c.b16 %v493, %v492
      %510 = vmatpush.bf16.msra.mxu0 %v501
      %511 = vmatpush.bf16.msra.mxu0 %v500
      %512 = vmatpush.bf16.msra.mxu0 %v499
      %513 = vmatpush.bf16.msra.mxu0 %v498
      %514 = vmatpush.bf16.msra.mxu0 %v497
      %515 = vmatpush.bf16.msra.mxu0 %v496
      %516 = vmatpush.bf16.msra.mxu0 %v495
      %517 = vmatpush.bf16.msra.mxu0 %v494
      %518 = vmatmul.bf16.gmra.mxu0 %v228
      %v519 = vpop.f32.mrf.mxu0
      %v520 = vadd.f32 %v383, %v519
      %v521 = vpop.f32.mrf.mxu0
      %v522 = vadd.f32 %v385, %v521
      %523 = vmatmul.bf16.gmra.mxu0 %v229
      %v524 = vpop.f32.mrf.mxu0
      %v525 = vadd.f32 %v388, %v524
      %v526 = vpop.f32.mrf.mxu0
      %v527 = vadd.f32 %v390, %v526
      %528 = vmatmul.bf16.gmra.mxu0 %v230
      %v529 = vpop.f32.mrf.mxu0
      %v530 = vadd.f32 %v393, %v529
      %v531 = vpop.f32.mrf.mxu0
      %v532 = vadd.f32 %v395, %v531
      %533 = vmatmul.bf16.gmra.mxu0 %v231
      %v534 = vpop.f32.mrf.mxu0
      %v535 = vadd.f32 %v398, %v534
      %v536 = vpop.f32.mrf.mxu0
      %v537 = vadd.f32 %v400, %v536
      %538 = vmatmul.bf16.gmra.mxu0 %v232
      %v539 = vpop.f32.mrf.mxu0
      %v540 = vadd.f32 %v403, %v539
      %v541 = vpop.f32.mrf.mxu0
      %v542 = vadd.f32 %v405, %v541
      %543 = vmatmul.bf16.gmra.mxu0 %v233
      %v544 = vpop.f32.mrf.mxu0
      %v545 = vadd.f32 %v408, %v544
      %v546 = vpop.f32.mrf.mxu0
      %v547 = vadd.f32 %v410, %v546
      %548 = vmatmul.bf16.gmra.mxu0 %v234
      %v549 = vpop.f32.mrf.mxu0
      %v550 = vadd.f32 %v413, %v549
      %v551 = vpop.f32.mrf.mxu0
      %v552 = vadd.f32 %v415, %v551
      %553 = vmatmul.bf16.gmra.mxu0 %v235
      %v554 = vpop.f32.mrf.mxu0
      %v555 = vadd.f32 %v418, %v554
      %v556 = vpop.f32.mrf.mxu0
      %v557 = vadd.f32 %v420, %v556
      %558 = vmatmul.bf16.gmra.mxu0 %v236
      %v559 = vpop.f32.mrf.mxu0
      %v560 = vadd.f32 %v423, %v559
      %v561 = vpop.f32.mrf.mxu0
      %v562 = vadd.f32 %v425, %v561
      %563 = vmatmul.bf16.gmra.mxu0 %v237
      %v564 = vpop.f32.mrf.mxu0
      %v565 = vadd.f32 %v428, %v564
      %v566 = vpop.f32.mrf.mxu0
      %v567 = vadd.f32 %v430, %v566
      %568 = vmatmul.bf16.gmra.mxu0 %v238
      %v569 = vpop.f32.mrf.mxu0
      %v570 = vadd.f32 %v433, %v569
      %v571 = vpop.f32.mrf.mxu0
      %v572 = vadd.f32 %v435, %v571
      %573 = vmatmul.bf16.gmra.mxu0 %v239
      %v574 = vpop.f32.mrf.mxu0
      %v575 = vadd.f32 %v438, %v574
      %v576 = vpop.f32.mrf.mxu0
      %v577 = vadd.f32 %v440, %v576
      %578 = vmatmul.bf16.gmra.mxu0 %v240
      %v579 = vpop.f32.mrf.mxu0
      %v580 = vadd.f32 %v443, %v579
      %v581 = vpop.f32.mrf.mxu0
      %v582 = vadd.f32 %v445, %v581
      %583 = vmatmul.bf16.gmra.mxu0 %v241
      %v584 = vpop.f32.mrf.mxu0
      %v585 = vadd.f32 %v448, %v584
      %v586 = vpop.f32.mrf.mxu0
      %v587 = vadd.f32 %v450, %v586
      %588 = vmatmul.bf16.gmra.mxu0 %v242
      %v589 = vpop.f32.mrf.mxu0
      %v590 = vadd.f32 %v453, %v589
      %v591 = vpop.f32.mrf.mxu0
      %v592 = vadd.f32 %v455, %v591
      %593 = vmatmul.bf16.gmra.mxu0 %v243
      %v594 = vpop.f32.mrf.mxu0
      %v595 = vadd.f32 %v458, %v594
      %v596 = vpop.f32.mrf.mxu0
      %v597 = vadd.f32 %v460, %v596
      %598 = vdwg.mxu0
      %v599 = vld [vmem:[%s184 + $0x2] sm:$0xff]
      %v600 = vld [vmem:[%s184 + $0xa] sm:$0xff]
      %v601 = vld [vmem:[%s184 + $0x1a] sm:$0xff]
      %v602 = vld [vmem:[%s184 + $0x22] sm:$0xff]
      %v603 = vld [vmem:[%s184 + $0x32] sm:$0xff]
      %v604 = vld [vmem:[%s184 + $0x3a] sm:$0xff]
      %v605 = vld [vmem:[%s184 + $0x4a] sm:$0xff]
      %v606 = vld [vmem:[%s184 + $0x52] sm:$0xff]
      %v607 = vld [vmem:[%s184 + $0x62] sm:$0xff]
      %v608 = vld [vmem:[%s184 + $0x6a] sm:$0xff]
      %v609 = vld [vmem:[%s184 + $0x7a] sm:$0xff]
      %v610 = vld [vmem:[%s184 + $0x82] sm:$0xff]
      %v611 = vld [vmem:[%s184 + $0x92] sm:$0xff]
      %v612 = vld [vmem:[%s184 + $0x9a] sm:$0xff]
      %v613 = vld [vmem:[%s184 + $0xaa] sm:$0xff]
      %v614 = vld [vmem:[%s184 + $0xb2] sm:$0xff]
      %v615 = vld [vmem:[%s184 + $0xc2] sm:$0xff]
      %v616 = vld [vmem:[%s184 + $0xca] sm:$0xff]
      %v617 = vld [vmem:[%s184 + $0xda] sm:$0xff]
      %v618 = vld [vmem:[%s184 + $0xe2] sm:$0xff]
      %v619 = vld [vmem:[%s184 + $0xf2] sm:$0xff]
      %v620 = vld [vmem:[%s184 + $0xfa] sm:$0xff]
      %v621 = vld [vmem:[%s184 + $0x10a] sm:$0xff]
      %v622 = vld [vmem:[%s184 + $0x112] sm:$0xff]
      %v623 = vld [vmem:[%s184 + $0x122] sm:$0xff]
      %v624 = vld [vmem:[%s184 + $0x12a] sm:$0xff]
      %v625 = vld [vmem:[%s184 + $0x13a] sm:$0xff]
      %v626 = vld [vmem:[%s184 + $0x142] sm:$0xff]
      %v627 = vld [vmem:[%s184 + $0x152] sm:$0xff]
      %v628 = vld [vmem:[%s184 + $0x15a] sm:$0xff]
      %v629 = vld [vmem:[%s184 + $0x16a] sm:$0xff]
      %v630 = vld [vmem:[%s184 + $0x172] sm:$0xff]
      %v631 = vpack.c.bf16 %v600, %v599
      %v632 = vpack.c.bf16 %v602, %v601
      %v633 = vpack.c.bf16 %v604, %v603
      %v634 = vpack.c.bf16 %v606, %v605
      %v635 = vpack.c.bf16 %v608, %v607
      %v636 = vpack.c.bf16 %v610, %v609
      %v637 = vpack.c.bf16 %v612, %v611
      %v638 = vpack.c.bf16 %v614, %v613
      %v639 = vpack.c.bf16 %v616, %v615
      %v640 = vpack.c.bf16 %v618, %v617
      %v641 = vpack.c.bf16 %v620, %v619
      %v642 = vpack.c.bf16 %v622, %v621
      %v643 = vpack.c.bf16 %v624, %v623
      %v644 = vpack.c.bf16 %v626, %v625
      %v645 = vpack.c.bf16 %v628, %v627
      %v646 = vpack.c.bf16 %v630, %v629
      %s647 = scalar_lea.vmem %s1, 128
      %v648 = vld [vmem:[%s647] sm:$0xf]
      %v649 = vld [vmem:[%s647 + $0x4] sm:$0xf]
      %v650 = vld [vmem:[%s647 + $0x8] sm:$0xf]
      %v651 = vld [vmem:[%s647 + $0xc] sm:$0xf]
      %v652 = vld [vmem:[%s647 + $0x10] sm:$0xf]
      %v653 = vld [vmem:[%s647 + $0x14] sm:$0xf]
      %v654 = vld [vmem:[%s647 + $0x18] sm:$0xf]
      %v655 = vld [vmem:[%s647 + $0x1c] sm:$0xf]
      %v656 = vld [vmem:[%s647 + $0x20] sm:$0xf]
      %v657 = vld [vmem:[%s647 + $0x24] sm:$0xf]
      %v658 = vld [vmem:[%s647 + $0x28] sm:$0xf]
      %v659 = vld [vmem:[%s647 + $0x2c] sm:$0xf]
      %v660 = vld [vmem:[%s647 + $0x30] sm:$0xf]
      %v661 = vld [vmem:[%s647 + $0x34] sm:$0xf]
      %v662 = vld [vmem:[%s647 + $0x38] sm:$0xf]
      %v663 = vld [vmem:[%s647 + $0x3c] sm:$0xf]
      %v680 = vunpack.c.l.b16 %v648
      %v681 = vunpack.c.l.b16 %v649
      %v682 = vunpack.c.l.b16 %v650
      %v683 = vunpack.c.l.b16 %v651
      %v684 = vunpack.c.l.b16 %v652
      %v685 = vunpack.c.l.b16 %v653
      %v686 = vunpack.c.l.b16 %v654
      %v687 = vunpack.c.l.b16 %v655
      %v688 = vunpack.c.l.b16 %v656
      %v689 = vunpack.c.l.b16 %v657
      %v690 = vunpack.c.l.b16 %v658
      %v691 = vunpack.c.l.b16 %v659
      %v692 = vunpack.c.l.b16 %v660
      %v693 = vunpack.c.l.b16 %v661
      %v694 = vunpack.c.l.b16 %v662
      %v695 = vunpack.c.l.b16 %v663
      %v696 = vpack.c.b16 %v681, %v680
      %v697 = vpack.c.b16 %v683, %v682
      %v698 = vpack.c.b16 %v685, %v684
      %v699 = vpack.c.b16 %v687, %v686
      %v700 = vpack.c.b16 %v689, %v688
      %v701 = vpack.c.b16 %v691, %v690
      %v702 = vpack.c.b16 %v693, %v692
      %v703 = vpack.c.b16 %v695, %v694
      %712 = vmatpush.bf16.msra.mxu0 %v703
      %713 = vmatpush.bf16.msra.mxu0 %v702
      %714 = vmatpush.bf16.msra.mxu0 %v701
      %715 = vmatpush.bf16.msra.mxu0 %v700
      %716 = vmatpush.bf16.msra.mxu0 %v699
      %717 = vmatpush.bf16.msra.mxu0 %v698
      %718 = vmatpush.bf16.msra.mxu0 %v697
      %719 = vmatpush.bf16.msra.mxu0 %v696
      %720 = vmatmul.bf16.gmra.mxu0 %v631
      %v721 = vpop.f32.mrf.mxu0
      %v722 = vadd.f32 0.0, %v721
      %v723 = vpop.f32.mrf.mxu0
      %v724 = vadd.f32 0.0, %v723
      %725 = vmatmul.bf16.gmra.mxu0 %v632
      %v726 = vpop.f32.mrf.mxu0
      %v727 = vadd.f32 0.0, %v726
      %v728 = vpop.f32.mrf.mxu0
      %v729 = vadd.f32 0.0, %v728
      %730 = vmatmul.bf16.gmra.mxu0 %v633
      %v731 = vpop.f32.mrf.mxu0
      %v732 = vadd.f32 0.0, %v731
      %v733 = vpop.f32.mrf.mxu0
      %v734 = vadd.f32 0.0, %v733
      %735 = vmatmul.bf16.gmra.mxu0 %v634
      %v736 = vpop.f32.mrf.mxu0
      %v737 = vadd.f32 0.0, %v736
      %v738 = vpop.f32.mrf.mxu0
      %v739 = vadd.f32 0.0, %v738
      %740 = vmatmul.bf16.gmra.mxu0 %v635
      %v741 = vpop.f32.mrf.mxu0
      %v742 = vadd.f32 0.0, %v741
      %v743 = vpop.f32.mrf.mxu0
      %v744 = vadd.f32 0.0, %v743
      %745 = vmatmul.bf16.gmra.mxu0 %v636
      %v746 = vpop.f32.mrf.mxu0
      %v747 = vadd.f32 0.0, %v746
      %v748 = vpop.f32.mrf.mxu0
      %v749 = vadd.f32 0.0, %v748
      %750 = vmatmul.bf16.gmra.mxu0 %v637
      %v751 = vpop.f32.mrf.mxu0
      %v752 = vadd.f32 0.0, %v751
      %v753 = vpop.f32.mrf.mxu0
      %v754 = vadd.f32 0.0, %v753
      %755 = vmatmul.bf16.gmra.mxu0 %v638
      %v756 = vpop.f32.mrf.mxu0
      %v757 = vadd.f32 0.0, %v756
      %v758 = vpop.f32.mrf.mxu0
      %v759 = vadd.f32 0.0, %v758
      %760 = vmatmul.bf16.gmra.mxu0 %v639
      %v761 = vpop.f32.mrf.mxu0
      %v762 = vadd.f32 0.0, %v761
      %v763 = vpop.f32.mrf.mxu0
      %v764 = vadd.f32 0.0, %v763
      %765 = vmatmul.bf16.gmra.mxu0 %v640
      %v766 = vpop.f32.mrf.mxu0
      %v767 = vadd.f32 0.0, %v766
      %v768 = vpop.f32.mrf.mxu0
      %v769 = vadd.f32 0.0, %v768
      %770 = vmatmul.bf16.gmra.mxu0 %v641
      %v771 = vpop.f32.mrf.mxu0
      %v772 = vadd.f32 0.0, %v771
      %v773 = vpop.f32.mrf.mxu0
      %v774 = vadd.f32 0.0, %v773
      %775 = vmatmul.bf16.gmra.mxu0 %v642
      %v776 = vpop.f32.mrf.mxu0
      %v777 = vadd.f32 0.0, %v776
      %v778 = vpop.f32.mrf.mxu0
      %v779 = vadd.f32 0.0, %v778
      %780 = vmatmul.bf16.gmra.mxu0 %v643
      %v781 = vpop.f32.mrf.mxu0
      %v782 = vadd.f32 0.0, %v781
      %v783 = vpop.f32.mrf.mxu0
      %v784 = vadd.f32 0.0, %v783
      %785 = vmatmul.bf16.gmra.mxu0 %v644
      %v786 = vpop.f32.mrf.mxu0
      %v787 = vadd.f32 0.0, %v786
      %v788 = vpop.f32.mrf.mxu0
      %v789 = vadd.f32 0.0, %v788
      %790 = vmatmul.bf16.gmra.mxu0 %v645
      %v791 = vpop.f32.mrf.mxu0
      %v792 = vadd.f32 0.0, %v791
      %v793 = vpop.f32.mrf.mxu0
      %v794 = vadd.f32 0.0, %v793
      %795 = vmatmul.bf16.gmra.mxu0 %v646
      %v796 = vpop.f32.mrf.mxu0
      %v797 = vadd.f32 0.0, %v796
      %v798 = vpop.f32.mrf.mxu0
      %v799 = vadd.f32 0.0, %v798
      %800 = vdwg.mxu0
      %v801 = vadd.f32 %v520, %v722
      %v802 = vadd.f32 %v522, %v724
      %v803 = vadd.f32 %v525, %v727
      %v804 = vadd.f32 %v527, %v729
      %v805 = vadd.f32 %v530, %v732
      %v806 = vadd.f32 %v532, %v734
      %v807 = vadd.f32 %v535, %v737
      %v808 = vadd.f32 %v537, %v739
      %v809 = vadd.f32 %v540, %v742
      %v810 = vadd.f32 %v542, %v744
      %v811 = vadd.f32 %v545, %v747
      %v812 = vadd.f32 %v547, %v749
      %v813 = vadd.f32 %v550, %v752
      %v814 = vadd.f32 %v552, %v754
      %v815 = vadd.f32 %v555, %v757
      %v816 = vadd.f32 %v557, %v759
      %v817 = vadd.f32 %v560, %v762
      %v818 = vadd.f32 %v562, %v764
      %v819 = vadd.f32 %v565, %v767
      %v820 = vadd.f32 %v567, %v769
      %v821 = vadd.f32 %v570, %v772
      %v822 = vadd.f32 %v572, %v774
      %v823 = vadd.f32 %v575, %v777
      %v824 = vadd.f32 %v577, %v779
      %v825 = vadd.f32 %v580, %v782
      %v826 = vadd.f32 %v582, %v784
      %v827 = vadd.f32 %v585, %v787
      %v828 = vadd.f32 %v587, %v789
      %v829 = vadd.f32 %v590, %v792
      %v830 = vadd.f32 %v592, %v794
      %v831 = vadd.f32 %v595, %v797
      %v832 = vadd.f32 %v597, %v799
      %s833 = scalar_lea.vmem %s184, 24
      %v834 = vld [vmem:[%s833] sm:$0xff]
      %v835 = vld [vmem:[%s833 + $0x8] sm:$0xff]
      %v836 = vld [vmem:[%s833 + $0x18] sm:$0xff]
      %v837 = vld [vmem:[%s833 + $0x20] sm:$0xff]
      %v838 = vld [vmem:[%s833 + $0x30] sm:$0xff]
      %v839 = vld [vmem:[%s833 + $0x38] sm:$0xff]
      %v840 = vld [vmem:[%s833 + $0x48] sm:$0xff]
      %v841 = vld [vmem:[%s833 + $0x50] sm:$0xff]
      %v842 = vld [vmem:[%s833 + $0x60] sm:$0xff]
      %v843 = vld [vmem:[%s833 + $0x68] sm:$0xff]
      %v844 = vld [vmem:[%s833 + $0x78] sm:$0xff]
      %v845 = vld [vmem:[%s833 + $0x80] sm:$0xff]
      %v846 = vld [vmem:[%s833 + $0x90] sm:$0xff]
      %v847 = vld [vmem:[%s833 + $0x98] sm:$0xff]
      %v848 = vld [vmem:[%s833 + $0xa8] sm:$0xff]
      %v849 = vld [vmem:[%s833 + $0xb0] sm:$0xff]
      %v850 = vld [vmem:[%s833 + $0xc0] sm:$0xff]
      %v851 = vld [vmem:[%s833 + $0xc8] sm:$0xff]
      %v852 = vld [vmem:[%s833 + $0xd8] sm:$0xff]
      %v853 = vld [vmem:[%s833 + $0xe0] sm:$0xff]
      %v854 = vld [vmem:[%s833 + $0xf0] sm:$0xff]
      %v855 = vld [vmem:[%s833 + $0xf8] sm:$0xff]
      %v856 = vld [vmem:[%s833 + $0x108] sm:$0xff]
      %v857 = vld [vmem:[%s833 + $0x110] sm:$0xff]
      %v858 = vld [vmem:[%s833 + $0x120] sm:$0xff]
      %v859 = vld [vmem:[%s833 + $0x128] sm:$0xff]
      %v860 = vld [vmem:[%s833 + $0x138] sm:$0xff]
      %v861 = vld [vmem:[%s833 + $0x140] sm:$0xff]
      %v862 = vld [vmem:[%s833 + $0x150] sm:$0xff]
      %v863 = vld [vmem:[%s833 + $0x158] sm:$0xff]
      %v864 = vld [vmem:[%s833 + $0x168] sm:$0xff]
      %v865 = vld [vmem:[%s833 + $0x170] sm:$0xff]
      %v866 = vpack.c.bf16 %v835, %v834
      %v867 = vpack.c.bf16 %v837, %v836
      %v868 = vpack.c.bf16 %v839, %v838
      %v869 = vpack.c.bf16 %v841, %v840
      %v870 = vpack.c.bf16 %v843, %v842
      %v871 = vpack.c.bf16 %v845, %v844
      %v872 = vpack.c.bf16 %v847, %v846
      %v873 = vpack.c.bf16 %v849, %v848
      %v874 = vpack.c.bf16 %v851, %v850
      %v875 = vpack.c.bf16 %v853, %v852
      %v876 = vpack.c.bf16 %v855, %v854
      %v877 = vpack.c.bf16 %v857, %v856
      %v878 = vpack.c.bf16 %v859, %v858
      %v879 = vpack.c.bf16 %v861, %v860
      %v880 = vpack.c.bf16 %v863, %v862
      %v881 = vpack.c.bf16 %v865, %v864
      %s882 = scalar_lea.vmem %s1, 192
      %v883 = vld [vmem:[%s882] sm:$0xf]
      %v884 = vld [vmem:[%s882 + $0x4] sm:$0xf]
      %v885 = vld [vmem:[%s882 + $0x8] sm:$0xf]
      %v886 = vld [vmem:[%s882 + $0xc] sm:$0xf]
      %v887 = vld [vmem:[%s882 + $0x10] sm:$0xf]
      %v888 = vld [vmem:[%s882 + $0x14] sm:$0xf]
      %v889 = vld [vmem:[%s882 + $0x18] sm:$0xf]
      %v890 = vld [vmem:[%s882 + $0x1c] sm:$0xf]
      %v891 = vld [vmem:[%s882 + $0x20] sm:$0xf]
      %v892 = vld [vmem:[%s882 + $0x24] sm:$0xf]
      %v893 = vld [vmem:[%s882 + $0x28] sm:$0xf]
      %v894 = vld [vmem:[%s882 + $0x2c] sm:$0xf]
      %v895 = vld [vmem:[%s882 + $0x30] sm:$0xf]
      %v896 = vld [vmem:[%s882 + $0x34] sm:$0xf]
      %v897 = vld [vmem:[%s882 + $0x38] sm:$0xf]
      %v898 = vld [vmem:[%s882 + $0x3c] sm:$0xf]
      %v915 = vunpack.c.l.b16 %v883
      %v916 = vunpack.c.l.b16 %v884
      %v917 = vunpack.c.l.b16 %v885
      %v918 = vunpack.c.l.b16 %v886
      %v919 = vunpack.c.l.b16 %v887
      %v920 = vunpack.c.l.b16 %v888
      %v921 = vunpack.c.l.b16 %v889
      %v922 = vunpack.c.l.b16 %v890
      %v923 = vunpack.c.l.b16 %v891
      %v924 = vunpack.c.l.b16 %v892
      %v925 = vunpack.c.l.b16 %v893
      %v926 = vunpack.c.l.b16 %v894
      %v927 = vunpack.c.l.b16 %v895
      %v928 = vunpack.c.l.b16 %v896
      %v929 = vunpack.c.l.b16 %v897
      %v930 = vunpack.c.l.b16 %v898
      %v931 = vpack.c.b16 %v916, %v915
      %v932 = vpack.c.b16 %v918, %v917
      %v933 = vpack.c.b16 %v920, %v919
      %v934 = vpack.c.b16 %v922, %v921
      %v935 = vpack.c.b16 %v924, %v923
      %v936 = vpack.c.b16 %v926, %v925
      %v937 = vpack.c.b16 %v928, %v927
      %v938 = vpack.c.b16 %v930, %v929
      %947 = vmatpush.bf16.msra.mxu0 %v938
      %948 = vmatpush.bf16.msra.mxu0 %v937
      %949 = vmatpush.bf16.msra.mxu0 %v936
      %950 = vmatpush.bf16.msra.mxu0 %v935
      %951 = vmatpush.bf16.msra.mxu0 %v934
      %952 = vmatpush.bf16.msra.mxu0 %v933
      %953 = vmatpush.bf16.msra.mxu0 %v932
      %954 = vmatpush.bf16.msra.mxu0 %v931
      %955 = vmatmul.bf16.gmra.mxu0 %v866
      %v956 = vpop.f32.mrf.mxu0
      %v957 = vadd.f32 0.0, %v956
      %v958 = vpop.f32.mrf.mxu0
      %v959 = vadd.f32 0.0, %v958
      %960 = vmatmul.bf16.gmra.mxu0 %v867
      %v961 = vpop.f32.mrf.mxu0
      %v962 = vadd.f32 0.0, %v961
      %v963 = vpop.f32.mrf.mxu0
      %v964 = vadd.f32 0.0, %v963
      %965 = vmatmul.bf16.gmra.mxu0 %v868
      %v966 = vpop.f32.mrf.mxu0
      %v967 = vadd.f32 0.0, %v966
      %v968 = vpop.f32.mrf.mxu0
      %v969 = vadd.f32 0.0, %v968
      %970 = vmatmul.bf16.gmra.mxu0 %v869
      %v971 = vpop.f32.mrf.mxu0
      %v972 = vadd.f32 0.0, %v971
      %v973 = vpop.f32.mrf.mxu0
      %v974 = vadd.f32 0.0, %v973
      %975 = vmatmul.bf16.gmra.mxu0 %v870
      %v976 = vpop.f32.mrf.mxu0
      %v977 = vadd.f32 0.0, %v976
      %v978 = vpop.f32.mrf.mxu0
      %v979 = vadd.f32 0.0, %v978
      %980 = vmatmul.bf16.gmra.mxu0 %v871
      %v981 = vpop.f32.mrf.mxu0
      %v982 = vadd.f32 0.0, %v981
      %v983 = vpop.f32.mrf.mxu0
      %v984 = vadd.f32 0.0, %v983
      %985 = vmatmul.bf16.gmra.mxu0 %v872
      %v986 = vpop.f32.mrf.mxu0
      %v987 = vadd.f32 0.0, %v986
      %v988 = vpop.f32.mrf.mxu0
      %v989 = vadd.f32 0.0, %v988
      %990 = vmatmul.bf16.gmra.mxu0 %v873
      %v991 = vpop.f32.mrf.mxu0
      %v992 = vadd.f32 0.0, %v991
      %v993 = vpop.f32.mrf.mxu0
      %v994 = vadd.f32 0.0, %v993
      %995 = vmatmul.bf16.gmra.mxu0 %v874
      %v996 = vpop.f32.mrf.mxu0
      %v997 = vadd.f32 0.0, %v996
      %v998 = vpop.f32.mrf.mxu0
      %v999 = vadd.f32 0.0, %v998
      %1000 = vmatmul.bf16.gmra.mxu0 %v875
      %v1001 = vpop.f32.mrf.mxu0
      %v1002 = vadd.f32 0.0, %v1001
      %v1003 = vpop.f32.mrf.mxu0
      %v1004 = vadd.f32 0.0, %v1003
      %1005 = vmatmul.bf16.gmra.mxu0 %v876
      %v1006 = vpop.f32.mrf.mxu0
      %v1007 = vadd.f32 0.0, %v1006
      %v1008 = vpop.f32.mrf.mxu0
      %v1009 = vadd.f32 0.0, %v1008
      %1010 = vmatmul.bf16.gmra.mxu0 %v877
      %v1011 = vpop.f32.mrf.mxu0
      %v1012 = vadd.f32 0.0, %v1011
      %v1013 = vpop.f32.mrf.mxu0
      %v1014 = vadd.f32 0.0, %v1013
      %1015 = vmatmul.bf16.gmra.mxu0 %v878
      %v1016 = vpop.f32.mrf.mxu0
      %v1017 = vadd.f32 0.0, %v1016
      %v1018 = vpop.f32.mrf.mxu0
      %v1019 = vadd.f32 0.0, %v1018
      %1020 = vmatmul.bf16.gmra.mxu0 %v879
      %v1021 = vpop.f32.mrf.mxu0
      %v1022 = vadd.f32 0.0, %v1021
      %v1023 = vpop.f32.mrf.mxu0
      %v1024 = vadd.f32 0.0, %v1023
      %1025 = vmatmul.bf16.gmra.mxu0 %v880
      %v1026 = vpop.f32.mrf.mxu0
      %v1027 = vadd.f32 0.0, %v1026
      %v1028 = vpop.f32.mrf.mxu0
      %v1029 = vadd.f32 0.0, %v1028
      %1030 = vmatmul.bf16.gmra.mxu0 %v881
      %v1031 = vpop.f32.mrf.mxu0
      %v1032 = vadd.f32 0.0, %v1031
      %v1033 = vpop.f32.mrf.mxu0
      %v1034 = vadd.f32 0.0, %v1033
      %1035 = vdwg.mxu0
      %v1036 = vadd.f32 %v801, %v957
      %v1037 = vadd.f32 %v802, %v959
      %v1038 = vadd.f32 %v803, %v962
      %v1039 = vadd.f32 %v804, %v964
      %v1040 = vadd.f32 %v805, %v967
      %v1041 = vadd.f32 %v806, %v969
      %v1042 = vadd.f32 %v807, %v972
      %v1043 = vadd.f32 %v808, %v974
      %v1044 = vadd.f32 %v809, %v977
      %v1045 = vadd.f32 %v810, %v979
      %v1046 = vadd.f32 %v811, %v982
      %v1047 = vadd.f32 %v812, %v984
      %v1048 = vadd.f32 %v813, %v987
      %v1049 = vadd.f32 %v814, %v989
      %v1050 = vadd.f32 %v815, %v992
      %v1051 = vadd.f32 %v816, %v994
      %v1052 = vadd.f32 %v817, %v997
      %v1053 = vadd.f32 %v818, %v999
      %v1054 = vadd.f32 %v819, %v1002
      %v1055 = vadd.f32 %v820, %v1004
      %v1056 = vadd.f32 %v821, %v1007
      %v1057 = vadd.f32 %v822, %v1009
      %v1058 = vadd.f32 %v823, %v1012
      %v1059 = vadd.f32 %v824, %v1014
      %v1060 = vadd.f32 %v825, %v1017
      %v1061 = vadd.f32 %v826, %v1019
      %v1062 = vadd.f32 %v827, %v1022
      %v1063 = vadd.f32 %v828, %v1024
      %v1064 = vadd.f32 %v829, %v1027
      %v1065 = vadd.f32 %v830, %v1029
      %v1066 = vadd.f32 %v831, %v1032
      %v1067 = vadd.f32 %v832, %v1034
      %v1068 = vld [vmem:[%s833 + $0x1] sm:$0xff]
      %v1069 = vld [vmem:[%s833 + $0x9] sm:$0xff]
      %v1070 = vld [vmem:[%s833 + $0x19] sm:$0xff]
      %v1071 = vld [vmem:[%s833 + $0x21] sm:$0xff]
      %v1072 = vld [vmem:[%s833 + $0x31] sm:$0xff]
      %v1073 = vld [vmem:[%s833 + $0x39] sm:$0xff]
      %v1074 = vld [vmem:[%s833 + $0x49] sm:$0xff]
      %v1075 = vld [vmem:[%s833 + $0x51] sm:$0xff]
      %v1076 = vld [vmem:[%s833 + $0x61] sm:$0xff]
      %v1077 = vld [vmem:[%s833 + $0x69] sm:$0xff]
      %v1078 = vld [vmem:[%s833 + $0x79] sm:$0xff]
      %v1079 = vld [vmem:[%s833 + $0x81] sm:$0xff]
      %v1080 = vld [vmem:[%s833 + $0x91] sm:$0xff]
      %v1081 = vld [vmem:[%s833 + $0x99] sm:$0xff]
      %v1082 = vld [vmem:[%s833 + $0xa9] sm:$0xff]
      %v1083 = vld [vmem:[%s833 + $0xb1] sm:$0xff]
      %v1084 = vld [vmem:[%s833 + $0xc1] sm:$0xff]
      %v1085 = vld [vmem:[%s833 + $0xc9] sm:$0xff]
      %v1086 = vld [vmem:[%s833 + $0xd9] sm:$0xff]
      %v1087 = vld [vmem:[%s833 + $0xe1] sm:$0xff]
      %v1088 = vld [vmem:[%s833 + $0xf1] sm:$0xff]
      %v1089 = vld [vmem:[%s833 + $0xf9] sm:$0xff]
      %v1090 = vld [vmem:[%s833 + $0x109] sm:$0xff]
      %v1091 = vld [vmem:[%s833 + $0x111] sm:$0xff]
      %v1092 = vld [vmem:[%s833 + $0x121] sm:$0xff]
      %v1093 = vld [vmem:[%s833 + $0x129] sm:$0xff]
      %v1094 = vld [vmem:[%s833 + $0x139] sm:$0xff]
      %v1095 = vld [vmem:[%s833 + $0x141] sm:$0xff]
      %v1096 = vld [vmem:[%s833 + $0x151] sm:$0xff]
      %v1097 = vld [vmem:[%s833 + $0x159] sm:$0xff]
      %v1098 = vld [vmem:[%s833 + $0x169] sm:$0xff]
      %v1099 = vld [vmem:[%s833 + $0x171] sm:$0xff]
      %v1100 = vpack.c.bf16 %v1069, %v1068
      %v1101 = vpack.c.bf16 %v1071, %v1070
      %v1102 = vpack.c.bf16 %v1073, %v1072
      %v1103 = vpack.c.bf16 %v1075, %v1074
      %v1104 = vpack.c.bf16 %v1077, %v1076
      %v1105 = vpack.c.bf16 %v1079, %v1078
      %v1106 = vpack.c.bf16 %v1081, %v1080
      %v1107 = vpack.c.bf16 %v1083, %v1082
      %v1108 = vpack.c.bf16 %v1085, %v1084
      %v1109 = vpack.c.bf16 %v1087, %v1086
      %v1110 = vpack.c.bf16 %v1089, %v1088
      %v1111 = vpack.c.bf16 %v1091, %v1090
      %v1112 = vpack.c.bf16 %v1093, %v1092
      %v1113 = vpack.c.bf16 %v1095, %v1094
      %v1114 = vpack.c.bf16 %v1097, %v1096
      %v1115 = vpack.c.bf16 %v1099, %v1098
      %s1116 = scalar_lea.vmem %s1, 256
      %v1117 = vld [vmem:[%s1116] sm:$0xf]
      %v1118 = vld [vmem:[%s1116 + $0x4] sm:$0xf]
      %v1119 = vld [vmem:[%s1116 + $0x8] sm:$0xf]
      %v1120 = vld [vmem:[%s1116 + $0xc] sm:$0xf]
      %v1121 = vld [vmem:[%s1116 + $0x10] sm:$0xf]
      %v1122 = vld [vmem:[%s1116 + $0x14] sm:$0xf]
      %v1123 = vld [vmem:[%s1116 + $0x18] sm:$0xf]
      %v1124 = vld [vmem:[%s1116 + $0x1c] sm:$0xf]
      %v1125 = vld [vmem:[%s1116 + $0x20] sm:$0xf]
      %v1126 = vld [vmem:[%s1116 + $0x24] sm:$0xf]
      %v1127 = vld [vmem:[%s1116 + $0x28] sm:$0xf]
      %v1128 = vld [vmem:[%s1116 + $0x2c] sm:$0xf]
      %v1129 = vld [vmem:[%s1116 + $0x30] sm:$0xf]
      %v1130 = vld [vmem:[%s1116 + $0x34] sm:$0xf]
      %v1131 = vld [vmem:[%s1116 + $0x38] sm:$0xf]
      %v1132 = vld [vmem:[%s1116 + $0x3c] sm:$0xf]
      %v1149 = vunpack.c.l.b16 %v1117
      %v1150 = vunpack.c.l.b16 %v1118
      %v1151 = vunpack.c.l.b16 %v1119
      %v1152 = vunpack.c.l.b16 %v1120
      %v1153 = vunpack.c.l.b16 %v1121
      %v1154 = vunpack.c.l.b16 %v1122
      %v1155 = vunpack.c.l.b16 %v1123
      %v1156 = vunpack.c.l.b16 %v1124
      %v1157 = vunpack.c.l.b16 %v1125
      %v1158 = vunpack.c.l.b16 %v1126
      %v1159 = vunpack.c.l.b16 %v1127
      %v1160 = vunpack.c.l.b16 %v1128
      %v1161 = vunpack.c.l.b16 %v1129
      %v1162 = vunpack.c.l.b16 %v1130
      %v1163 = vunpack.c.l.b16 %v1131
      %v1164 = vunpack.c.l.b16 %v1132
      %v1165 = vpack.c.b16 %v1150, %v1149
      %v1166 = vpack.c.b16 %v1152, %v1151
      %v1167 = vpack.c.b16 %v1154, %v1153
      %v1168 = vpack.c.b16 %v1156, %v1155
      %v1169 = vpack.c.b16 %v1158, %v1157
      %v1170 = vpack.c.b16 %v1160, %v1159
      %v1171 = vpack.c.b16 %v1162, %v1161
      %v1172 = vpack.c.b16 %v1164, %v1163
      %1181 = vmatpush.bf16.msra.mxu0 %v1172
      %1182 = vmatpush.bf16.msra.mxu0 %v1171
      %1183 = vmatpush.bf16.msra.mxu0 %v1170
      %1184 = vmatpush.bf16.msra.mxu0 %v1169
      %1185 = vmatpush.bf16.msra.mxu0 %v1168
      %1186 = vmatpush.bf16.msra.mxu0 %v1167
      %1187 = vmatpush.bf16.msra.mxu0 %v1166
      %1188 = vmatpush.bf16.msra.mxu0 %v1165
      %1189 = vmatmul.bf16.gmra.mxu0 %v1100
      %v1190 = vpop.f32.mrf.mxu0
      %v1191 = vadd.f32 0.0, %v1190
      %v1192 = vpop.f32.mrf.mxu0
      %v1193 = vadd.f32 0.0, %v1192
      %1194 = vmatmul.bf16.gmra.mxu0 %v1101
      %v1195 = vpop.f32.mrf.mxu0
      %v1196 = vadd.f32 0.0, %v1195
      %v1197 = vpop.f32.mrf.mxu0
      %v1198 = vadd.f32 0.0, %v1197
      %1199 = vmatmul.bf16.gmra.mxu0 %v1102
      %v1200 = vpop.f32.mrf.mxu0
      %v1201 = vadd.f32 0.0, %v1200
      %v1202 = vpop.f32.mrf.mxu0
      %v1203 = vadd.f32 0.0, %v1202
      %1204 = vmatmul.bf16.gmra.mxu0 %v1103
      %v1205 = vpop.f32.mrf.mxu0
      %v1206 = vadd.f32 0.0, %v1205
      %v1207 = vpop.f32.mrf.mxu0
      %v1208 = vadd.f32 0.0, %v1207
      %1209 = vmatmul.bf16.gmra.mxu0 %v1104
      %v1210 = vpop.f32.mrf.mxu0
      %v1211 = vadd.f32 0.0, %v1210
      %v1212 = vpop.f32.mrf.mxu0
      %v1213 = vadd.f32 0.0, %v1212
      %1214 = vmatmul.bf16.gmra.mxu0 %v1105
      %v1215 = vpop.f32.mrf.mxu0
      %v1216 = vadd.f32 0.0, %v1215
      %v1217 = vpop.f32.mrf.mxu0
      %v1218 = vadd.f32 0.0, %v1217
      %1219 = vmatmul.bf16.gmra.mxu0 %v1106
      %v1220 = vpop.f32.mrf.mxu0
      %v1221 = vadd.f32 0.0, %v1220
      %v1222 = vpop.f32.mrf.mxu0
      %v1223 = vadd.f32 0.0, %v1222
      %1224 = vmatmul.bf16.gmra.mxu0 %v1107
      %v1225 = vpop.f32.mrf.mxu0
      %v1226 = vadd.f32 0.0, %v1225
      %v1227 = vpop.f32.mrf.mxu0
      %v1228 = vadd.f32 0.0, %v1227
      %1229 = vmatmul.bf16.gmra.mxu0 %v1108
      %v1230 = vpop.f32.mrf.mxu0
      %v1231 = vadd.f32 0.0, %v1230
      %v1232 = vpop.f32.mrf.mxu0
      %v1233 = vadd.f32 0.0, %v1232
      %1234 = vmatmul.bf16.gmra.mxu0 %v1109
      %v1235 = vpop.f32.mrf.mxu0
      %v1236 = vadd.f32 0.0, %v1235
      %v1237 = vpop.f32.mrf.mxu0
      %v1238 = vadd.f32 0.0, %v1237
      %1239 = vmatmul.bf16.gmra.mxu0 %v1110
      %v1240 = vpop.f32.mrf.mxu0
      %v1241 = vadd.f32 0.0, %v1240
      %v1242 = vpop.f32.mrf.mxu0
      %v1243 = vadd.f32 0.0, %v1242
      %1244 = vmatmul.bf16.gmra.mxu0 %v1111
      %v1245 = vpop.f32.mrf.mxu0
      %v1246 = vadd.f32 0.0, %v1245
      %v1247 = vpop.f32.mrf.mxu0
      %v1248 = vadd.f32 0.0, %v1247
      %1249 = vmatmul.bf16.gmra.mxu0 %v1112
      %v1250 = vpop.f32.mrf.mxu0
      %v1251 = vadd.f32 0.0, %v1250
      %v1252 = vpop.f32.mrf.mxu0
      %v1253 = vadd.f32 0.0, %v1252
      %1254 = vmatmul.bf16.gmra.mxu0 %v1113
      %v1255 = vpop.f32.mrf.mxu0
      %v1256 = vadd.f32 0.0, %v1255
      %v1257 = vpop.f32.mrf.mxu0
      %v1258 = vadd.f32 0.0, %v1257
      %1259 = vmatmul.bf16.gmra.mxu0 %v1114
      %v1260 = vpop.f32.mrf.mxu0
      %v1261 = vadd.f32 0.0, %v1260
      %v1262 = vpop.f32.mrf.mxu0
      %v1263 = vadd.f32 0.0, %v1262
      %1264 = vmatmul.bf16.gmra.mxu0 %v1115
      %v1265 = vpop.f32.mrf.mxu0
      %v1266 = vadd.f32 0.0, %v1265
      %v1267 = vpop.f32.mrf.mxu0
      %v1268 = vadd.f32 0.0, %v1267
      %1269 = vdwg.mxu0
      %v1270 = vadd.f32 %v1036, %v1191
      %v1271 = vadd.f32 %v1037, %v1193
      %v1272 = vadd.f32 %v1038, %v1196
      %v1273 = vadd.f32 %v1039, %v1198
      %v1274 = vadd.f32 %v1040, %v1201
      %v1275 = vadd.f32 %v1041, %v1203
      %v1276 = vadd.f32 %v1042, %v1206
      %v1277 = vadd.f32 %v1043, %v1208
      %v1278 = vadd.f32 %v1044, %v1211
      %v1279 = vadd.f32 %v1045, %v1213
      %v1280 = vadd.f32 %v1046, %v1216
      %v1281 = vadd.f32 %v1047, %v1218
      %v1282 = vadd.f32 %v1048, %v1221
      %v1283 = vadd.f32 %v1049, %v1223
      %v1284 = vadd.f32 %v1050, %v1226
      %v1285 = vadd.f32 %v1051, %v1228
      %v1286 = vadd.f32 %v1052, %v1231
      %v1287 = vadd.f32 %v1053, %v1233
      %v1288 = vadd.f32 %v1054, %v1236
      %v1289 = vadd.f32 %v1055, %v1238
      %v1290 = vadd.f32 %v1056, %v1241
      %v1291 = vadd.f32 %v1057, %v1243
      %v1292 = vadd.f32 %v1058, %v1246
      %v1293 = vadd.f32 %v1059, %v1248
      %v1294 = vadd.f32 %v1060, %v1251
      %v1295 = vadd.f32 %v1061, %v1253
      %v1296 = vadd.f32 %v1062, %v1256
      %v1297 = vadd.f32 %v1063, %v1258
      %v1298 = vadd.f32 %v1064, %v1261
      %v1299 = vadd.f32 %v1065, %v1263
      %v1300 = vadd.f32 %v1066, %v1266
      %v1301 = vadd.f32 %v1067, %v1268
      %v1302 = vld [vmem:[%s833 + $0x2] sm:$0xff]
      %v1303 = vld [vmem:[%s833 + $0xa] sm:$0xff]
      %v1304 = vld [vmem:[%s833 + $0x1a] sm:$0xff]
      %v1305 = vld [vmem:[%s833 + $0x22] sm:$0xff]
      %v1306 = vld [vmem:[%s833 + $0x32] sm:$0xff]
      %v1307 = vld [vmem:[%s833 + $0x3a] sm:$0xff]
      %v1308 = vld [vmem:[%s833 + $0x4a] sm:$0xff]
      %v1309 = vld [vmem:[%s833 + $0x52] sm:$0xff]
      %v1310 = vld [vmem:[%s833 + $0x62] sm:$0xff]
      %v1311 = vld [vmem:[%s833 + $0x6a] sm:$0xff]
      %v1312 = vld [vmem:[%s833 + $0x7a] sm:$0xff]
      %v1313 = vld [vmem:[%s833 + $0x82] sm:$0xff]
      %v1314 = vld [vmem:[%s833 + $0x92] sm:$0xff]
      %v1315 = vld [vmem:[%s833 + $0x9a] sm:$0xff]
      %v1316 = vld [vmem:[%s833 + $0xaa] sm:$0xff]
      %v1317 = vld [vmem:[%s833 + $0xb2] sm:$0xff]
      %v1318 = vld [vmem:[%s833 + $0xc2] sm:$0xff]
      %v1319 = vld [vmem:[%s833 + $0xca] sm:$0xff]
      %v1320 = vld [vmem:[%s833 + $0xda] sm:$0xff]
      %v1321 = vld [vmem:[%s833 + $0xe2] sm:$0xff]
      %v1322 = vld [vmem:[%s833 + $0xf2] sm:$0xff]
      %v1323 = vld [vmem:[%s833 + $0xfa] sm:$0xff]
      %v1324 = vld [vmem:[%s833 + $0x10a] sm:$0xff]
      %v1325 = vld [vmem:[%s833 + $0x112] sm:$0xff]
      %v1326 = vld [vmem:[%s833 + $0x122] sm:$0xff]
      %v1327 = vld [vmem:[%s833 + $0x12a] sm:$0xff]
      %v1328 = vld [vmem:[%s833 + $0x13a] sm:$0xff]
      %v1329 = vld [vmem:[%s833 + $0x142] sm:$0xff]
      %v1330 = vld [vmem:[%s833 + $0x152] sm:$0xff]
      %v1331 = vld [vmem:[%s833 + $0x15a] sm:$0xff]
      %v1332 = vld [vmem:[%s833 + $0x16a] sm:$0xff]
      %v1333 = vld [vmem:[%s833 + $0x172] sm:$0xff]
      %v1334 = vpack.c.bf16 %v1303, %v1302
      %v1335 = vpack.c.bf16 %v1305, %v1304
      %v1336 = vpack.c.bf16 %v1307, %v1306
      %v1337 = vpack.c.bf16 %v1309, %v1308
      %v1338 = vpack.c.bf16 %v1311, %v1310
      %v1339 = vpack.c.bf16 %v1313, %v1312
      %v1340 = vpack.c.bf16 %v1315, %v1314
      %v1341 = vpack.c.bf16 %v1317, %v1316
      %v1342 = vpack.c.bf16 %v1319, %v1318
      %v1343 = vpack.c.bf16 %v1321, %v1320
      %v1344 = vpack.c.bf16 %v1323, %v1322
      %v1345 = vpack.c.bf16 %v1325, %v1324
      %v1346 = vpack.c.bf16 %v1327, %v1326
      %v1347 = vpack.c.bf16 %v1329, %v1328
      %v1348 = vpack.c.bf16 %v1331, %v1330
      %v1349 = vpack.c.bf16 %v1333, %v1332
      %s1350 = scalar_lea.vmem %s1, 320
      %v1351 = vld [vmem:[%s1350] sm:$0xf]
      %v1352 = vld [vmem:[%s1350 + $0x4] sm:$0xf]
      %v1353 = vld [vmem:[%s1350 + $0x8] sm:$0xf]
      %v1354 = vld [vmem:[%s1350 + $0xc] sm:$0xf]
      %v1355 = vld [vmem:[%s1350 + $0x10] sm:$0xf]
      %v1356 = vld [vmem:[%s1350 + $0x14] sm:$0xf]
      %v1357 = vld [vmem:[%s1350 + $0x18] sm:$0xf]
      %v1358 = vld [vmem:[%s1350 + $0x1c] sm:$0xf]
      %v1359 = vld [vmem:[%s1350 + $0x20] sm:$0xf]
      %v1360 = vld [vmem:[%s1350 + $0x24] sm:$0xf]
      %v1361 = vld [vmem:[%s1350 + $0x28] sm:$0xf]
      %v1362 = vld [vmem:[%s1350 + $0x2c] sm:$0xf]
      %v1363 = vld [vmem:[%s1350 + $0x30] sm:$0xf]
      %v1364 = vld [vmem:[%s1350 + $0x34] sm:$0xf]
      %v1365 = vld [vmem:[%s1350 + $0x38] sm:$0xf]
      %v1366 = vld [vmem:[%s1350 + $0x3c] sm:$0xf]
      %v1383 = vunpack.c.l.b16 %v1351
      %v1384 = vunpack.c.l.b16 %v1352
      %v1385 = vunpack.c.l.b16 %v1353
      %v1386 = vunpack.c.l.b16 %v1354
      %v1387 = vunpack.c.l.b16 %v1355
      %v1388 = vunpack.c.l.b16 %v1356
      %v1389 = vunpack.c.l.b16 %v1357
      %v1390 = vunpack.c.l.b16 %v1358
      %v1391 = vunpack.c.l.b16 %v1359
      %v1392 = vunpack.c.l.b16 %v1360
      %v1393 = vunpack.c.l.b16 %v1361
      %v1394 = vunpack.c.l.b16 %v1362
      %v1395 = vunpack.c.l.b16 %v1363
      %v1396 = vunpack.c.l.b16 %v1364
      %v1397 = vunpack.c.l.b16 %v1365
      %v1398 = vunpack.c.l.b16 %v1366
      %v1399 = vpack.c.b16 %v1384, %v1383
      %v1400 = vpack.c.b16 %v1386, %v1385
      %v1401 = vpack.c.b16 %v1388, %v1387
      %v1402 = vpack.c.b16 %v1390, %v1389
      %v1403 = vpack.c.b16 %v1392, %v1391
      %v1404 = vpack.c.b16 %v1394, %v1393
      %v1405 = vpack.c.b16 %v1396, %v1395
      %v1406 = vpack.c.b16 %v1398, %v1397
      %1415 = vmatpush.bf16.msra.mxu0 %v1406
      %1416 = vmatpush.bf16.msra.mxu0 %v1405
      %1417 = vmatpush.bf16.msra.mxu0 %v1404
      %1418 = vmatpush.bf16.msra.mxu0 %v1403
      %1419 = vmatpush.bf16.msra.mxu0 %v1402
      %1420 = vmatpush.bf16.msra.mxu0 %v1401
      %1421 = vmatpush.bf16.msra.mxu0 %v1400
      %1422 = vmatpush.bf16.msra.mxu0 %v1399
      %1423 = vmatmul.bf16.gmra.mxu0 %v1334
      %v1424 = vpop.f32.mrf.mxu0
      %v1425 = vadd.f32 0.0, %v1424
      %v1426 = vpop.f32.mrf.mxu0
      %v1427 = vadd.f32 0.0, %v1426
      %1428 = vmatmul.bf16.gmra.mxu0 %v1335
      %v1429 = vpop.f32.mrf.mxu0
      %v1430 = vadd.f32 0.0, %v1429
      %v1431 = vpop.f32.mrf.mxu0
      %v1432 = vadd.f32 0.0, %v1431
      %1433 = vmatmul.bf16.gmra.mxu0 %v1336
      %v1434 = vpop.f32.mrf.mxu0
      %v1435 = vadd.f32 0.0, %v1434
      %v1436 = vpop.f32.mrf.mxu0
      %v1437 = vadd.f32 0.0, %v1436
      %1438 = vmatmul.bf16.gmra.mxu0 %v1337
      %v1439 = vpop.f32.mrf.mxu0
      %v1440 = vadd.f32 0.0, %v1439
      %v1441 = vpop.f32.mrf.mxu0
      %v1442 = vadd.f32 0.0, %v1441
      %1443 = vmatmul.bf16.gmra.mxu0 %v1338
      %v1444 = vpop.f32.mrf.mxu0
      %v1445 = vadd.f32 0.0, %v1444
      %v1446 = vpop.f32.mrf.mxu0
      %v1447 = vadd.f32 0.0, %v1446
      %1448 = vmatmul.bf16.gmra.mxu0 %v1339
      %v1449 = vpop.f32.mrf.mxu0
      %v1450 = vadd.f32 0.0, %v1449
      %v1451 = vpop.f32.mrf.mxu0
      %v1452 = vadd.f32 0.0, %v1451
      %1453 = vmatmul.bf16.gmra.mxu0 %v1340
      %v1454 = vpop.f32.mrf.mxu0
      %v1455 = vadd.f32 0.0, %v1454
      %v1456 = vpop.f32.mrf.mxu0
      %v1457 = vadd.f32 0.0, %v1456
      %1458 = vmatmul.bf16.gmra.mxu0 %v1341
      %v1459 = vpop.f32.mrf.mxu0
      %v1460 = vadd.f32 0.0, %v1459
      %v1461 = vpop.f32.mrf.mxu0
      %v1462 = vadd.f32 0.0, %v1461
      %1463 = vmatmul.bf16.gmra.mxu0 %v1342
      %v1464 = vpop.f32.mrf.mxu0
      %v1465 = vadd.f32 0.0, %v1464
      %v1466 = vpop.f32.mrf.mxu0
      %v1467 = vadd.f32 0.0, %v1466
      %1468 = vmatmul.bf16.gmra.mxu0 %v1343
      %v1469 = vpop.f32.mrf.mxu0
      %v1470 = vadd.f32 0.0, %v1469
      %v1471 = vpop.f32.mrf.mxu0
      %v1472 = vadd.f32 0.0, %v1471
      %1473 = vmatmul.bf16.gmra.mxu0 %v1344
      %v1474 = vpop.f32.mrf.mxu0
      %v1475 = vadd.f32 0.0, %v1474
      %v1476 = vpop.f32.mrf.mxu0
      %v1477 = vadd.f32 0.0, %v1476
      %1478 = vmatmul.bf16.gmra.mxu0 %v1345
      %v1479 = vpop.f32.mrf.mxu0
      %v1480 = vadd.f32 0.0, %v1479
      %v1481 = vpop.f32.mrf.mxu0
      %v1482 = vadd.f32 0.0, %v1481
      %1483 = vmatmul.bf16.gmra.mxu0 %v1346
      %v1484 = vpop.f32.mrf.mxu0
      %v1485 = vadd.f32 0.0, %v1484
      %v1486 = vpop.f32.mrf.mxu0
      %v1487 = vadd.f32 0.0, %v1486
      %1488 = vmatmul.bf16.gmra.mxu0 %v1347
      %v1489 = vpop.f32.mrf.mxu0
      %v1490 = vadd.f32 0.0, %v1489
      %v1491 = vpop.f32.mrf.mxu0
      %v1492 = vadd.f32 0.0, %v1491
      %1493 = vmatmul.bf16.gmra.mxu0 %v1348
      %v1494 = vpop.f32.mrf.mxu0
      %v1495 = vadd.f32 0.0, %v1494
      %v1496 = vpop.f32.mrf.mxu0
      %v1497 = vadd.f32 0.0, %v1496
      %1498 = vmatmul.bf16.gmra.mxu0 %v1349
      %v1499 = vpop.f32.mrf.mxu0
      %v1500 = vadd.f32 0.0, %v1499
      %v1501 = vpop.f32.mrf.mxu0
      %v1502 = vadd.f32 0.0, %v1501
      %1503 = vdwg.mxu0
      %v1504 = vadd.f32 %v1270, %v1425
      %v1505 = vadd.f32 %v1271, %v1427
      %v1506 = vadd.f32 %v1272, %v1430
      %v1507 = vadd.f32 %v1273, %v1432
      %v1508 = vadd.f32 %v1274, %v1435
      %v1509 = vadd.f32 %v1275, %v1437
      %v1510 = vadd.f32 %v1276, %v1440
      %v1511 = vadd.f32 %v1277, %v1442
      %v1512 = vadd.f32 %v1278, %v1445
      %v1513 = vadd.f32 %v1279, %v1447
      %v1514 = vadd.f32 %v1280, %v1450
      %v1515 = vadd.f32 %v1281, %v1452
      %v1516 = vadd.f32 %v1282, %v1455
      %v1517 = vadd.f32 %v1283, %v1457
      %v1518 = vadd.f32 %v1284, %v1460
      %v1519 = vadd.f32 %v1285, %v1462
      %v1520 = vadd.f32 %v1286, %v1465
      %v1521 = vadd.f32 %v1287, %v1467
      %v1522 = vadd.f32 %v1288, %v1470
      %v1523 = vadd.f32 %v1289, %v1472
      %v1524 = vadd.f32 %v1290, %v1475
      %v1525 = vadd.f32 %v1291, %v1477
      %v1526 = vadd.f32 %v1292, %v1480
      %v1527 = vadd.f32 %v1293, %v1482
      %v1528 = vadd.f32 %v1294, %v1485
      %v1529 = vadd.f32 %v1295, %v1487
      %v1530 = vadd.f32 %v1296, %v1490
      %v1531 = vadd.f32 %v1297, %v1492
      %v1532 = vadd.f32 %v1298, %v1495
      %v1533 = vadd.f32 %v1299, %v1497
      %v1534 = vadd.f32 %v1300, %v1500
      %v1535 = vadd.f32 %v1301, %v1502
      %s1536 = scalar_lea.vmem %s184, 48
      %v1537 = vld [vmem:[%s1536] sm:$0xff]
      %v1538 = vld [vmem:[%s1536 + $0x8] sm:$0xff]
      %v1539 = vld [vmem:[%s1536 + $0x18] sm:$0xff]
      %v1540 = vld [vmem:[%s1536 + $0x20] sm:$0xff]
      %v1541 = vld [vmem:[%s1536 + $0x30] sm:$0xff]
      %v1542 = vld [vmem:[%s1536 + $0x38] sm:$0xff]
      %v1543 = vld [vmem:[%s1536 + $0x48] sm:$0xff]
      %v1544 = vld [vmem:[%s1536 + $0x50] sm:$0xff]
      %v1545 = vld [vmem:[%s1536 + $0x60] sm:$0xff]
      %v1546 = vld [vmem:[%s1536 + $0x68] sm:$0xff]
      %v1547 = vld [vmem:[%s1536 + $0x78] sm:$0xff]
      %v1548 = vld [vmem:[%s1536 + $0x80] sm:$0xff]
      %v1549 = vld [vmem:[%s1536 + $0x90] sm:$0xff]
      %v1550 = vld [vmem:[%s1536 + $0x98] sm:$0xff]
      %v1551 = vld [vmem:[%s1536 + $0xa8] sm:$0xff]
      %v1552 = vld [vmem:[%s1536 + $0xb0] sm:$0xff]
      %v1553 = vld [vmem:[%s1536 + $0xc0] sm:$0xff]
      %v1554 = vld [vmem:[%s1536 + $0xc8] sm:$0xff]
      %v1555 = vld [vmem:[%s1536 + $0xd8] sm:$0xff]
      %v1556 = vld [vmem:[%s1536 + $0xe0] sm:$0xff]
      %v1557 = vld [vmem:[%s1536 + $0xf0] sm:$0xff]
      %v1558 = vld [vmem:[%s1536 + $0xf8] sm:$0xff]
      %v1559 = vld [vmem:[%s1536 + $0x108] sm:$0xff]
      %v1560 = vld [vmem:[%s1536 + $0x110] sm:$0xff]
      %v1561 = vld [vmem:[%s1536 + $0x120] sm:$0xff]
      %v1562 = vld [vmem:[%s1536 + $0x128] sm:$0xff]
      %v1563 = vld [vmem:[%s1536 + $0x138] sm:$0xff]
      %v1564 = vld [vmem:[%s1536 + $0x140] sm:$0xff]
      %v1565 = vld [vmem:[%s1536 + $0x150] sm:$0xff]
      %v1566 = vld [vmem:[%s1536 + $0x158] sm:$0xff]
      %v1567 = vld [vmem:[%s1536 + $0x168] sm:$0xff]
      %v1568 = vld [vmem:[%s1536 + $0x170] sm:$0xff]
      %v1569 = vpack.c.bf16 %v1538, %v1537
      %v1570 = vpack.c.bf16 %v1540, %v1539
      %v1571 = vpack.c.bf16 %v1542, %v1541
      %v1572 = vpack.c.bf16 %v1544, %v1543
      %v1573 = vpack.c.bf16 %v1546, %v1545
      %v1574 = vpack.c.bf16 %v1548, %v1547
      %v1575 = vpack.c.bf16 %v1550, %v1549
      %v1576 = vpack.c.bf16 %v1552, %v1551
      %v1577 = vpack.c.bf16 %v1554, %v1553
      %v1578 = vpack.c.bf16 %v1556, %v1555
      %v1579 = vpack.c.bf16 %v1558, %v1557
      %v1580 = vpack.c.bf16 %v1560, %v1559
      %v1581 = vpack.c.bf16 %v1562, %v1561
      %v1582 = vpack.c.bf16 %v1564, %v1563
      %v1583 = vpack.c.bf16 %v1566, %v1565
      %v1584 = vpack.c.bf16 %v1568, %v1567
      %s1585 = scalar_lea.vmem %s1, 384
      %v1586 = vld [vmem:[%s1585] sm:$0xf]
      %v1587 = vld [vmem:[%s1585 + $0x4] sm:$0xf]
      %v1588 = vld [vmem:[%s1585 + $0x8] sm:$0xf]
      %v1589 = vld [vmem:[%s1585 + $0xc] sm:$0xf]
      %v1590 = vld [vmem:[%s1585 + $0x10] sm:$0xf]
      %v1591 = vld [vmem:[%s1585 + $0x14] sm:$0xf]
      %v1592 = vld [vmem:[%s1585 + $0x18] sm:$0xf]
      %v1593 = vld [vmem:[%s1585 + $0x1c] sm:$0xf]
      %v1594 = vld [vmem:[%s1585 + $0x20] sm:$0xf]
      %v1595 = vld [vmem:[%s1585 + $0x24] sm:$0xf]
      %v1596 = vld [vmem:[%s1585 + $0x28] sm:$0xf]
      %v1597 = vld [vmem:[%s1585 + $0x2c] sm:$0xf]
      %v1598 = vld [vmem:[%s1585 + $0x30] sm:$0xf]
      %v1599 = vld [vmem:[%s1585 + $0x34] sm:$0xf]
      %v1600 = vld [vmem:[%s1585 + $0x38] sm:$0xf]
      %v1601 = vld [vmem:[%s1585 + $0x3c] sm:$0xf]
      %v1618 = vunpack.c.l.b16 %v1586
      %v1619 = vunpack.c.l.b16 %v1587
      %v1620 = vunpack.c.l.b16 %v1588
      %v1621 = vunpack.c.l.b16 %v1589
      %v1622 = vunpack.c.l.b16 %v1590
      %v1623 = vunpack.c.l.b16 %v1591
      %v1624 = vunpack.c.l.b16 %v1592
      %v1625 = vunpack.c.l.b16 %v1593
      %v1626 = vunpack.c.l.b16 %v1594
      %v1627 = vunpack.c.l.b16 %v1595
      %v1628 = vunpack.c.l.b16 %v1596
      %v1629 = vunpack.c.l.b16 %v1597
      %v1630 = vunpack.c.l.b16 %v1598
      %v1631 = vunpack.c.l.b16 %v1599
      %v1632 = vunpack.c.l.b16 %v1600
      %v1633 = vunpack.c.l.b16 %v1601
      %v1634 = vpack.c.b16 %v1619, %v1618
      %v1635 = vpack.c.b16 %v1621, %v1620
      %v1636 = vpack.c.b16 %v1623, %v1622
      %v1637 = vpack.c.b16 %v1625, %v1624
      %v1638 = vpack.c.b16 %v1627, %v1626
      %v1639 = vpack.c.b16 %v1629, %v1628
      %v1640 = vpack.c.b16 %v1631, %v1630
      %v1641 = vpack.c.b16 %v1633, %v1632
      %1650 = vmatpush.bf16.msra.mxu0 %v1641
      %1651 = vmatpush.bf16.msra.mxu0 %v1640
      %1652 = vmatpush.bf16.msra.mxu0 %v1639
      %1653 = vmatpush.bf16.msra.mxu0 %v1638
      %1654 = vmatpush.bf16.msra.mxu0 %v1637
      %1655 = vmatpush.bf16.msra.mxu0 %v1636
      %1656 = vmatpush.bf16.msra.mxu0 %v1635
      %1657 = vmatpush.bf16.msra.mxu0 %v1634
      %1658 = vmatmul.bf16.gmra.mxu0 %v1569
      %v1659 = vpop.f32.mrf.mxu0
      %v1660 = vadd.f32 0.0, %v1659
      %v1661 = vpop.f32.mrf.mxu0
      %v1662 = vadd.f32 0.0, %v1661
      %1663 = vmatmul.bf16.gmra.mxu0 %v1570
      %v1664 = vpop.f32.mrf.mxu0
      %v1665 = vadd.f32 0.0, %v1664
      %v1666 = vpop.f32.mrf.mxu0
      %v1667 = vadd.f32 0.0, %v1666
      %1668 = vmatmul.bf16.gmra.mxu0 %v1571
      %v1669 = vpop.f32.mrf.mxu0
      %v1670 = vadd.f32 0.0, %v1669
      %v1671 = vpop.f32.mrf.mxu0
      %v1672 = vadd.f32 0.0, %v1671
      %1673 = vmatmul.bf16.gmra.mxu0 %v1572
      %v1674 = vpop.f32.mrf.mxu0
      %v1675 = vadd.f32 0.0, %v1674
      %v1676 = vpop.f32.mrf.mxu0
      %v1677 = vadd.f32 0.0, %v1676
      %1678 = vmatmul.bf16.gmra.mxu0 %v1573
      %v1679 = vpop.f32.mrf.mxu0
      %v1680 = vadd.f32 0.0, %v1679
      %v1681 = vpop.f32.mrf.mxu0
      %v1682 = vadd.f32 0.0, %v1681
      %1683 = vmatmul.bf16.gmra.mxu0 %v1574
      %v1684 = vpop.f32.mrf.mxu0
      %v1685 = vadd.f32 0.0, %v1684
      %v1686 = vpop.f32.mrf.mxu0
      %v1687 = vadd.f32 0.0, %v1686
      %1688 = vmatmul.bf16.gmra.mxu0 %v1575
      %v1689 = vpop.f32.mrf.mxu0
      %v1690 = vadd.f32 0.0, %v1689
      %v1691 = vpop.f32.mrf.mxu0
      %v1692 = vadd.f32 0.0, %v1691
      %1693 = vmatmul.bf16.gmra.mxu0 %v1576
      %v1694 = vpop.f32.mrf.mxu0
      %v1695 = vadd.f32 0.0, %v1694
      %v1696 = vpop.f32.mrf.mxu0
      %v1697 = vadd.f32 0.0, %v1696
      %1698 = vmatmul.bf16.gmra.mxu0 %v1577
      %v1699 = vpop.f32.mrf.mxu0
      %v1700 = vadd.f32 0.0, %v1699
      %v1701 = vpop.f32.mrf.mxu0
      %v1702 = vadd.f32 0.0, %v1701
      %1703 = vmatmul.bf16.gmra.mxu0 %v1578
      %v1704 = vpop.f32.mrf.mxu0
      %v1705 = vadd.f32 0.0, %v1704
      %v1706 = vpop.f32.mrf.mxu0
      %v1707 = vadd.f32 0.0, %v1706
      %1708 = vmatmul.bf16.gmra.mxu0 %v1579
      %v1709 = vpop.f32.mrf.mxu0
      %v1710 = vadd.f32 0.0, %v1709
      %v1711 = vpop.f32.mrf.mxu0
      %v1712 = vadd.f32 0.0, %v1711
      %1713 = vmatmul.bf16.gmra.mxu0 %v1580
      %v1714 = vpop.f32.mrf.mxu0
      %v1715 = vadd.f32 0.0, %v1714
      %v1716 = vpop.f32.mrf.mxu0
      %v1717 = vadd.f32 0.0, %v1716
      %1718 = vmatmul.bf16.gmra.mxu0 %v1581
      %v1719 = vpop.f32.mrf.mxu0
      %v1720 = vadd.f32 0.0, %v1719
      %v1721 = vpop.f32.mrf.mxu0
      %v1722 = vadd.f32 0.0, %v1721
      %1723 = vmatmul.bf16.gmra.mxu0 %v1582
      %v1724 = vpop.f32.mrf.mxu0
      %v1725 = vadd.f32 0.0, %v1724
      %v1726 = vpop.f32.mrf.mxu0
      %v1727 = vadd.f32 0.0, %v1726
      %1728 = vmatmul.bf16.gmra.mxu0 %v1583
      %v1729 = vpop.f32.mrf.mxu0
      %v1730 = vadd.f32 0.0, %v1729
      %v1731 = vpop.f32.mrf.mxu0
      %v1732 = vadd.f32 0.0, %v1731
      %1733 = vmatmul.bf16.gmra.mxu0 %v1584
      %v1734 = vpop.f32.mrf.mxu0
      %v1735 = vadd.f32 0.0, %v1734
      %v1736 = vpop.f32.mrf.mxu0
      %v1737 = vadd.f32 0.0, %v1736
      %1738 = vdwg.mxu0
      %v1739 = vadd.f32 %v1504, %v1660
      %v1740 = vadd.f32 %v1505, %v1662
      %v1741 = vadd.f32 %v1506, %v1665
      %v1742 = vadd.f32 %v1507, %v1667
      %v1743 = vadd.f32 %v1508, %v1670
      %v1744 = vadd.f32 %v1509, %v1672
      %v1745 = vadd.f32 %v1510, %v1675
      %v1746 = vadd.f32 %v1511, %v1677
      %v1747 = vadd.f32 %v1512, %v1680
      %v1748 = vadd.f32 %v1513, %v1682
      %v1749 = vadd.f32 %v1514, %v1685
      %v1750 = vadd.f32 %v1515, %v1687
      %v1751 = vadd.f32 %v1516, %v1690
      %v1752 = vadd.f32 %v1517, %v1692
      %v1753 = vadd.f32 %v1518, %v1695
      %v1754 = vadd.f32 %v1519, %v1697
      %v1755 = vadd.f32 %v1520, %v1700
      %v1756 = vadd.f32 %v1521, %v1702
      %v1757 = vadd.f32 %v1522, %v1705
      %v1758 = vadd.f32 %v1523, %v1707
      %v1759 = vadd.f32 %v1524, %v1710
      %v1760 = vadd.f32 %v1525, %v1712
      %v1761 = vadd.f32 %v1526, %v1715
      %v1762 = vadd.f32 %v1527, %v1717
      %v1763 = vadd.f32 %v1528, %v1720
      %v1764 = vadd.f32 %v1529, %v1722
      %v1765 = vadd.f32 %v1530, %v1725
      %v1766 = vadd.f32 %v1531, %v1727
      %v1767 = vadd.f32 %v1532, %v1730
      %v1768 = vadd.f32 %v1533, %v1732
      %v1769 = vadd.f32 %v1534, %v1735
      %v1770 = vadd.f32 %v1535, %v1737
      %v1771 = vld [vmem:[%s1536 + $0x1] sm:$0xff]
      %v1772 = vld [vmem:[%s1536 + $0x9] sm:$0xff]
      %v1773 = vld [vmem:[%s1536 + $0x19] sm:$0xff]
      %v1774 = vld [vmem:[%s1536 + $0x21] sm:$0xff]
      %v1775 = vld [vmem:[%s1536 + $0x31] sm:$0xff]
      %v1776 = vld [vmem:[%s1536 + $0x39] sm:$0xff]
      %v1777 = vld [vmem:[%s1536 + $0x49] sm:$0xff]
      %v1778 = vld [vmem:[%s1536 + $0x51] sm:$0xff]
      %v1779 = vld [vmem:[%s1536 + $0x61] sm:$0xff]
      %v1780 = vld [vmem:[%s1536 + $0x69] sm:$0xff]
      %v1781 = vld [vmem:[%s1536 + $0x79] sm:$0xff]
      %v1782 = vld [vmem:[%s1536 + $0x81] sm:$0xff]
      %v1783 = vld [vmem:[%s1536 + $0x91] sm:$0xff]
      %v1784 = vld [vmem:[%s1536 + $0x99] sm:$0xff]
      %v1785 = vld [vmem:[%s1536 + $0xa9] sm:$0xff]
      %v1786 = vld [vmem:[%s1536 + $0xb1] sm:$0xff]
      %v1787 = vld [vmem:[%s1536 + $0xc1] sm:$0xff]
      %v1788 = vld [vmem:[%s1536 + $0xc9] sm:$0xff]
      %v1789 = vld [vmem:[%s1536 + $0xd9] sm:$0xff]
      %v1790 = vld [vmem:[%s1536 + $0xe1] sm:$0xff]
      %v1791 = vld [vmem:[%s1536 + $0xf1] sm:$0xff]
      %v1792 = vld [vmem:[%s1536 + $0xf9] sm:$0xff]
      %v1793 = vld [vmem:[%s1536 + $0x109] sm:$0xff]
      %v1794 = vld [vmem:[%s1536 + $0x111] sm:$0xff]
      %v1795 = vld [vmem:[%s1536 + $0x121] sm:$0xff]
      %v1796 = vld [vmem:[%s1536 + $0x129] sm:$0xff]
      %v1797 = vld [vmem:[%s1536 + $0x139] sm:$0xff]
      %v1798 = vld [vmem:[%s1536 + $0x141] sm:$0xff]
      %v1799 = vld [vmem:[%s1536 + $0x151] sm:$0xff]
      %v1800 = vld [vmem:[%s1536 + $0x159] sm:$0xff]
      %v1801 = vld [vmem:[%s1536 + $0x169] sm:$0xff]
      %v1802 = vld [vmem:[%s1536 + $0x171] sm:$0xff]
      %v1803 = vpack.c.bf16 %v1772, %v1771
      %v1804 = vpack.c.bf16 %v1774, %v1773
      %v1805 = vpack.c.bf16 %v1776, %v1775
      %v1806 = vpack.c.bf16 %v1778, %v1777
      %v1807 = vpack.c.bf16 %v1780, %v1779
      %v1808 = vpack.c.bf16 %v1782, %v1781
      %v1809 = vpack.c.bf16 %v1784, %v1783
      %v1810 = vpack.c.bf16 %v1786, %v1785
      %v1811 = vpack.c.bf16 %v1788, %v1787
      %v1812 = vpack.c.bf16 %v1790, %v1789
      %v1813 = vpack.c.bf16 %v1792, %v1791
      %v1814 = vpack.c.bf16 %v1794, %v1793
      %v1815 = vpack.c.bf16 %v1796, %v1795
      %v1816 = vpack.c.bf16 %v1798, %v1797
      %v1817 = vpack.c.bf16 %v1800, %v1799
      %v1818 = vpack.c.bf16 %v1802, %v1801
      %s1819 = scalar_lea.vmem %s1, 448
      %v1820 = vld [vmem:[%s1819] sm:$0xf]
      %v1821 = vld [vmem:[%s1819 + $0x4] sm:$0xf]
      %v1822 = vld [vmem:[%s1819 + $0x8] sm:$0xf]
      %v1823 = vld [vmem:[%s1819 + $0xc] sm:$0xf]
      %v1824 = vld [vmem:[%s1819 + $0x10] sm:$0xf]
      %v1825 = vld [vmem:[%s1819 + $0x14] sm:$0xf]
      %v1826 = vld [vmem:[%s1819 + $0x18] sm:$0xf]
      %v1827 = vld [vmem:[%s1819 + $0x1c] sm:$0xf]
      %v1828 = vld [vmem:[%s1819 + $0x20] sm:$0xf]
      %v1829 = vld [vmem:[%s1819 + $0x24] sm:$0xf]
      %v1830 = vld [vmem:[%s1819 + $0x28] sm:$0xf]
      %v1831 = vld [vmem:[%s1819 + $0x2c] sm:$0xf]
      %v1832 = vld [vmem:[%s1819 + $0x30] sm:$0xf]
      %v1833 = vld [vmem:[%s1819 + $0x34] sm:$0xf]
      %v1834 = vld [vmem:[%s1819 + $0x38] sm:$0xf]
      %v1835 = vld [vmem:[%s1819 + $0x3c] sm:$0xf]
      %v1852 = vunpack.c.l.b16 %v1820
      %v1853 = vunpack.c.l.b16 %v1821
      %v1854 = vunpack.c.l.b16 %v1822
      %v1855 = vunpack.c.l.b16 %v1823
      %v1856 = vunpack.c.l.b16 %v1824
      %v1857 = vunpack.c.l.b16 %v1825
      %v1858 = vunpack.c.l.b16 %v1826
      %v1859 = vunpack.c.l.b16 %v1827
      %v1860 = vunpack.c.l.b16 %v1828
      %v1861 = vunpack.c.l.b16 %v1829
      %v1862 = vunpack.c.l.b16 %v1830
      %v1863 = vunpack.c.l.b16 %v1831
      %v1864 = vunpack.c.l.b16 %v1832
      %v1865 = vunpack.c.l.b16 %v1833
      %v1866 = vunpack.c.l.b16 %v1834
      %v1867 = vunpack.c.l.b16 %v1835
      %v1868 = vpack.c.b16 %v1853, %v1852
      %v1869 = vpack.c.b16 %v1855, %v1854
      %v1870 = vpack.c.b16 %v1857, %v1856
      %v1871 = vpack.c.b16 %v1859, %v1858
      %v1872 = vpack.c.b16 %v1861, %v1860
      %v1873 = vpack.c.b16 %v1863, %v1862
      %v1874 = vpack.c.b16 %v1865, %v1864
      %v1875 = vpack.c.b16 %v1867, %v1866
      %1884 = vmatpush.bf16.msra.mxu0 %v1875
      %1885 = vmatpush.bf16.msra.mxu0 %v1874
      %1886 = vmatpush.bf16.msra.mxu0 %v1873
      %1887 = vmatpush.bf16.msra.mxu0 %v1872
      %1888 = vmatpush.bf16.msra.mxu0 %v1871
      %1889 = vmatpush.bf16.msra.mxu0 %v1870
      %1890 = vmatpush.bf16.msra.mxu0 %v1869
      %1891 = vmatpush.bf16.msra.mxu0 %v1868
      %1892 = vmatmul.bf16.gmra.mxu0 %v1803
      %v1893 = vpop.f32.mrf.mxu0
      %v1894 = vadd.f32 0.0, %v1893
      %v1895 = vpop.f32.mrf.mxu0
      %v1896 = vadd.f32 0.0, %v1895
      %1897 = vmatmul.bf16.gmra.mxu0 %v1804
      %v1898 = vpop.f32.mrf.mxu0
      %v1899 = vadd.f32 0.0, %v1898
      %v1900 = vpop.f32.mrf.mxu0
      %v1901 = vadd.f32 0.0, %v1900
      %1902 = vmatmul.bf16.gmra.mxu0 %v1805
      %v1903 = vpop.f32.mrf.mxu0
      %v1904 = vadd.f32 0.0, %v1903
      %v1905 = vpop.f32.mrf.mxu0
      %v1906 = vadd.f32 0.0, %v1905
      %1907 = vmatmul.bf16.gmra.mxu0 %v1806
      %v1908 = vpop.f32.mrf.mxu0
      %v1909 = vadd.f32 0.0, %v1908
      %v1910 = vpop.f32.mrf.mxu0
      %v1911 = vadd.f32 0.0, %v1910
      %1912 = vmatmul.bf16.gmra.mxu0 %v1807
      %v1913 = vpop.f32.mrf.mxu0
      %v1914 = vadd.f32 0.0, %v1913
      %v1915 = vpop.f32.mrf.mxu0
      %v1916 = vadd.f32 0.0, %v1915
      %1917 = vmatmul.bf16.gmra.mxu0 %v1808
      %v1918 = vpop.f32.mrf.mxu0
      %v1919 = vadd.f32 0.0, %v1918
      %v1920 = vpop.f32.mrf.mxu0
      %v1921 = vadd.f32 0.0, %v1920
      %1922 = vmatmul.bf16.gmra.mxu0 %v1809
      %v1923 = vpop.f32.mrf.mxu0
      %v1924 = vadd.f32 0.0, %v1923
      %v1925 = vpop.f32.mrf.mxu0
      %v1926 = vadd.f32 0.0, %v1925
      %1927 = vmatmul.bf16.gmra.mxu0 %v1810
      %v1928 = vpop.f32.mrf.mxu0
      %v1929 = vadd.f32 0.0, %v1928
      %v1930 = vpop.f32.mrf.mxu0
      %v1931 = vadd.f32 0.0, %v1930
      %1932 = vmatmul.bf16.gmra.mxu0 %v1811
      %v1933 = vpop.f32.mrf.mxu0
      %v1934 = vadd.f32 0.0, %v1933
      %v1935 = vpop.f32.mrf.mxu0
      %v1936 = vadd.f32 0.0, %v1935
      %1937 = vmatmul.bf16.gmra.mxu0 %v1812
      %v1938 = vpop.f32.mrf.mxu0
      %v1939 = vadd.f32 0.0, %v1938
      %v1940 = vpop.f32.mrf.mxu0
      %v1941 = vadd.f32 0.0, %v1940
      %1942 = vmatmul.bf16.gmra.mxu0 %v1813
      %v1943 = vpop.f32.mrf.mxu0
      %v1944 = vadd.f32 0.0, %v1943
      %v1945 = vpop.f32.mrf.mxu0
      %v1946 = vadd.f32 0.0, %v1945
      %1947 = vmatmul.bf16.gmra.mxu0 %v1814
      %v1948 = vpop.f32.mrf.mxu0
      %v1949 = vadd.f32 0.0, %v1948
      %v1950 = vpop.f32.mrf.mxu0
      %v1951 = vadd.f32 0.0, %v1950
      %1952 = vmatmul.bf16.gmra.mxu0 %v1815
      %v1953 = vpop.f32.mrf.mxu0
      %v1954 = vadd.f32 0.0, %v1953
      %v1955 = vpop.f32.mrf.mxu0
      %v1956 = vadd.f32 0.0, %v1955
      %1957 = vmatmul.bf16.gmra.mxu0 %v1816
      %v1958 = vpop.f32.mrf.mxu0
      %v1959 = vadd.f32 0.0, %v1958
      %v1960 = vpop.f32.mrf.mxu0
      %v1961 = vadd.f32 0.0, %v1960
      %1962 = vmatmul.bf16.gmra.mxu0 %v1817
      %v1963 = vpop.f32.mrf.mxu0
      %v1964 = vadd.f32 0.0, %v1963
      %v1965 = vpop.f32.mrf.mxu0
      %v1966 = vadd.f32 0.0, %v1965
      %1967 = vmatmul.bf16.gmra.mxu0 %v1818
      %v1968 = vpop.f32.mrf.mxu0
      %v1969 = vadd.f32 0.0, %v1968
      %v1970 = vpop.f32.mrf.mxu0
      %v1971 = vadd.f32 0.0, %v1970
      %1972 = vdwg.mxu0
      %v1973 = vadd.f32 %v1739, %v1894
      %v1974 = vadd.f32 %v1740, %v1896
      %v1975 = vadd.f32 %v1741, %v1899
      %v1976 = vadd.f32 %v1742, %v1901
      %v1977 = vadd.f32 %v1743, %v1904
      %v1978 = vadd.f32 %v1744, %v1906
      %v1979 = vadd.f32 %v1745, %v1909
      %v1980 = vadd.f32 %v1746, %v1911
      %v1981 = vadd.f32 %v1747, %v1914
      %v1982 = vadd.f32 %v1748, %v1916
      %v1983 = vadd.f32 %v1749, %v1919
      %v1984 = vadd.f32 %v1750, %v1921
      %v1985 = vadd.f32 %v1751, %v1924
      %v1986 = vadd.f32 %v1752, %v1926
      %v1987 = vadd.f32 %v1753, %v1929
      %v1988 = vadd.f32 %v1754, %v1931
      %v1989 = vadd.f32 %v1755, %v1934
      %v1990 = vadd.f32 %v1756, %v1936
      %v1991 = vadd.f32 %v1757, %v1939
      %v1992 = vadd.f32 %v1758, %v1941
      %v1993 = vadd.f32 %v1759, %v1944
      %v1994 = vadd.f32 %v1760, %v1946
      %v1995 = vadd.f32 %v1761, %v1949
      %v1996 = vadd.f32 %v1762, %v1951
      %v1997 = vadd.f32 %v1763, %v1954
      %v1998 = vadd.f32 %v1764, %v1956
      %v1999 = vadd.f32 %v1765, %v1959
      %v2000 = vadd.f32 %v1766, %v1961
      %v2001 = vadd.f32 %v1767, %v1964
      %v2002 = vadd.f32 %v1768, %v1966
      %v2003 = vadd.f32 %v1769, %v1969
      %v2004 = vadd.f32 %v1770, %v1971
      %v2005 = vld [vmem:[%s1536 + $0x2] sm:$0xff]
      %v2006 = vld [vmem:[%s1536 + $0xa] sm:$0xff]
      %v2007 = vld [vmem:[%s1536 + $0x1a] sm:$0xff]
      %v2008 = vld [vmem:[%s1536 + $0x22] sm:$0xff]
      %v2009 = vld [vmem:[%s1536 + $0x32] sm:$0xff]
      %v2010 = vld [vmem:[%s1536 + $0x3a] sm:$0xff]
      %v2011 = vld [vmem:[%s1536 + $0x4a] sm:$0xff]
      %v2012 = vld [vmem:[%s1536 + $0x52] sm:$0xff]
      %v2013 = vld [vmem:[%s1536 + $0x62] sm:$0xff]
      %v2014 = vld [vmem:[%s1536 + $0x6a] sm:$0xff]
      %v2015 = vld [vmem:[%s1536 + $0x7a] sm:$0xff]
      %v2016 = vld [vmem:[%s1536 + $0x82] sm:$0xff]
      %v2017 = vld [vmem:[%s1536 + $0x92] sm:$0xff]
      %v2018 = vld [vmem:[%s1536 + $0x9a] sm:$0xff]
      %v2019 = vld [vmem:[%s1536 + $0xaa] sm:$0xff]
      %v2020 = vld [vmem:[%s1536 + $0xb2] sm:$0xff]
      %v2021 = vld [vmem:[%s1536 + $0xc2] sm:$0xff]
      %v2022 = vld [vmem:[%s1536 + $0xca] sm:$0xff]
      %v2023 = vld [vmem:[%s1536 + $0xda] sm:$0xff]
      %v2024 = vld [vmem:[%s1536 + $0xe2] sm:$0xff]
      %v2025 = vld [vmem:[%s1536 + $0xf2] sm:$0xff]
      %v2026 = vld [vmem:[%s1536 + $0xfa] sm:$0xff]
      %v2027 = vld [vmem:[%s1536 + $0x10a] sm:$0xff]
      %v2028 = vld [vmem:[%s1536 + $0x112] sm:$0xff]
      %v2029 = vld [vmem:[%s1536 + $0x122] sm:$0xff]
      %v2030 = vld [vmem:[%s1536 + $0x12a] sm:$0xff]
      %v2031 = vld [vmem:[%s1536 + $0x13a] sm:$0xff]
      %v2032 = vld [vmem:[%s1536 + $0x142] sm:$0xff]
      %v2033 = vld [vmem:[%s1536 + $0x152] sm:$0xff]
      %v2034 = vld [vmem:[%s1536 + $0x15a] sm:$0xff]
      %v2035 = vld [vmem:[%s1536 + $0x16a] sm:$0xff]
      %v2036 = vld [vmem:[%s1536 + $0x172] sm:$0xff]
      %v2037 = vpack.c.bf16 %v2006, %v2005
      %v2038 = vpack.c.bf16 %v2008, %v2007
      %v2039 = vpack.c.bf16 %v2010, %v2009
      %v2040 = vpack.c.bf16 %v2012, %v2011
      %v2041 = vpack.c.bf16 %v2014, %v2013
      %v2042 = vpack.c.bf16 %v2016, %v2015
      %v2043 = vpack.c.bf16 %v2018, %v2017
      %v2044 = vpack.c.bf16 %v2020, %v2019
      %v2045 = vpack.c.bf16 %v2022, %v2021
      %v2046 = vpack.c.bf16 %v2024, %v2023
      %v2047 = vpack.c.bf16 %v2026, %v2025
      %v2048 = vpack.c.bf16 %v2028, %v2027
      %v2049 = vpack.c.bf16 %v2030, %v2029
      %v2050 = vpack.c.bf16 %v2032, %v2031
      %v2051 = vpack.c.bf16 %v2034, %v2033
      %v2052 = vpack.c.bf16 %v2036, %v2035
      %s2053 = scalar_lea.vmem %s1, 512
      %v2054 = vld [vmem:[%s2053] sm:$0xf]
      %v2055 = vld [vmem:[%s2053 + $0x4] sm:$0xf]
      %v2056 = vld [vmem:[%s2053 + $0x8] sm:$0xf]
      %v2057 = vld [vmem:[%s2053 + $0xc] sm:$0xf]
      %v2058 = vld [vmem:[%s2053 + $0x10] sm:$0xf]
      %v2059 = vld [vmem:[%s2053 + $0x14] sm:$0xf]
      %v2060 = vld [vmem:[%s2053 + $0x18] sm:$0xf]
      %v2061 = vld [vmem:[%s2053 + $0x1c] sm:$0xf]
      %v2062 = vld [vmem:[%s2053 + $0x20] sm:$0xf]
      %v2063 = vld [vmem:[%s2053 + $0x24] sm:$0xf]
      %v2064 = vld [vmem:[%s2053 + $0x28] sm:$0xf]
      %v2065 = vld [vmem:[%s2053 + $0x2c] sm:$0xf]
      %v2066 = vld [vmem:[%s2053 + $0x30] sm:$0xf]
      %v2067 = vld [vmem:[%s2053 + $0x34] sm:$0xf]
      %v2068 = vld [vmem:[%s2053 + $0x38] sm:$0xf]
      %v2069 = vld [vmem:[%s2053 + $0x3c] sm:$0xf]
      %v2086 = vunpack.c.l.b16 %v2054
      %v2087 = vunpack.c.l.b16 %v2055
      %v2088 = vunpack.c.l.b16 %v2056
      %v2089 = vunpack.c.l.b16 %v2057
      %v2090 = vunpack.c.l.b16 %v2058
      %v2091 = vunpack.c.l.b16 %v2059
      %v2092 = vunpack.c.l.b16 %v2060
      %v2093 = vunpack.c.l.b16 %v2061
      %v2094 = vunpack.c.l.b16 %v2062
      %v2095 = vunpack.c.l.b16 %v2063
      %v2096 = vunpack.c.l.b16 %v2064
      %v2097 = vunpack.c.l.b16 %v2065
      %v2098 = vunpack.c.l.b16 %v2066
      %v2099 = vunpack.c.l.b16 %v2067
      %v2100 = vunpack.c.l.b16 %v2068
      %v2101 = vunpack.c.l.b16 %v2069
      %v2102 = vpack.c.b16 %v2087, %v2086
      %v2103 = vpack.c.b16 %v2089, %v2088
      %v2104 = vpack.c.b16 %v2091, %v2090
      %v2105 = vpack.c.b16 %v2093, %v2092
      %v2106 = vpack.c.b16 %v2095, %v2094
      %v2107 = vpack.c.b16 %v2097, %v2096
      %v2108 = vpack.c.b16 %v2099, %v2098
      %v2109 = vpack.c.b16 %v2101, %v2100
      %2118 = vmatpush.bf16.msra.mxu0 %v2109
      %2119 = vmatpush.bf16.msra.mxu0 %v2108
      %2120 = vmatpush.bf16.msra.mxu0 %v2107
      %2121 = vmatpush.bf16.msra.mxu0 %v2106
      %2122 = vmatpush.bf16.msra.mxu0 %v2105
      %2123 = vmatpush.bf16.msra.mxu0 %v2104
      %2124 = vmatpush.bf16.msra.mxu0 %v2103
      %2125 = vmatpush.bf16.msra.mxu0 %v2102
      %2126 = vmatmul.bf16.gmra.mxu0 %v2037
      %v2127 = vpop.f32.mrf.mxu0
      %v2128 = vadd.f32 0.0, %v2127
      %v2129 = vpop.f32.mrf.mxu0
      %v2130 = vadd.f32 0.0, %v2129
      %2131 = vmatmul.bf16.gmra.mxu0 %v2038
      %v2132 = vpop.f32.mrf.mxu0
      %v2133 = vadd.f32 0.0, %v2132
      %v2134 = vpop.f32.mrf.mxu0
      %v2135 = vadd.f32 0.0, %v2134
      %2136 = vmatmul.bf16.gmra.mxu0 %v2039
      %v2137 = vpop.f32.mrf.mxu0
      %v2138 = vadd.f32 0.0, %v2137
      %v2139 = vpop.f32.mrf.mxu0
      %v2140 = vadd.f32 0.0, %v2139
      %2141 = vmatmul.bf16.gmra.mxu0 %v2040
      %v2142 = vpop.f32.mrf.mxu0
      %v2143 = vadd.f32 0.0, %v2142
      %v2144 = vpop.f32.mrf.mxu0
      %v2145 = vadd.f32 0.0, %v2144
      %2146 = vmatmul.bf16.gmra.mxu0 %v2041
      %v2147 = vpop.f32.mrf.mxu0
      %v2148 = vadd.f32 0.0, %v2147
      %v2149 = vpop.f32.mrf.mxu0
      %v2150 = vadd.f32 0.0, %v2149
      %2151 = vmatmul.bf16.gmra.mxu0 %v2042
      %v2152 = vpop.f32.mrf.mxu0
      %v2153 = vadd.f32 0.0, %v2152
      %v2154 = vpop.f32.mrf.mxu0
      %v2155 = vadd.f32 0.0, %v2154
      %2156 = vmatmul.bf16.gmra.mxu0 %v2043
      %v2157 = vpop.f32.mrf.mxu0
      %v2158 = vadd.f32 0.0, %v2157
      %v2159 = vpop.f32.mrf.mxu0
      %v2160 = vadd.f32 0.0, %v2159
      %2161 = vmatmul.bf16.gmra.mxu0 %v2044
      %v2162 = vpop.f32.mrf.mxu0
      %v2163 = vadd.f32 0.0, %v2162
      %v2164 = vpop.f32.mrf.mxu0
      %v2165 = vadd.f32 0.0, %v2164
      %2166 = vmatmul.bf16.gmra.mxu0 %v2045
      %v2167 = vpop.f32.mrf.mxu0
      %v2168 = vadd.f32 0.0, %v2167
      %v2169 = vpop.f32.mrf.mxu0
      %v2170 = vadd.f32 0.0, %v2169
      %2171 = vmatmul.bf16.gmra.mxu0 %v2046
      %v2172 = vpop.f32.mrf.mxu0
      %v2173 = vadd.f32 0.0, %v2172
      %v2174 = vpop.f32.mrf.mxu0
      %v2175 = vadd.f32 0.0, %v2174
      %2176 = vmatmul.bf16.gmra.mxu0 %v2047
      %v2177 = vpop.f32.mrf.mxu0
      %v2178 = vadd.f32 0.0, %v2177
      %v2179 = vpop.f32.mrf.mxu0
      %v2180 = vadd.f32 0.0, %v2179
      %2181 = vmatmul.bf16.gmra.mxu0 %v2048
      %v2182 = vpop.f32.mrf.mxu0
      %v2183 = vadd.f32 0.0, %v2182
      %v2184 = vpop.f32.mrf.mxu0
      %v2185 = vadd.f32 0.0, %v2184
      %2186 = vmatmul.bf16.gmra.mxu0 %v2049
      %v2187 = vpop.f32.mrf.mxu0
      %v2188 = vadd.f32 0.0, %v2187
      %v2189 = vpop.f32.mrf.mxu0
      %v2190 = vadd.f32 0.0, %v2189
      %2191 = vmatmul.bf16.gmra.mxu0 %v2050
      %v2192 = vpop.f32.mrf.mxu0
      %v2193 = vadd.f32 0.0, %v2192
      %v2194 = vpop.f32.mrf.mxu0
      %v2195 = vadd.f32 0.0, %v2194
      %2196 = vmatmul.bf16.gmra.mxu0 %v2051
      %v2197 = vpop.f32.mrf.mxu0
      %v2198 = vadd.f32 0.0, %v2197
      %v2199 = vpop.f32.mrf.mxu0
      %v2200 = vadd.f32 0.0, %v2199
      %2201 = vmatmul.bf16.gmra.mxu0 %v2052
      %v2202 = vpop.f32.mrf.mxu0
      %v2203 = vadd.f32 0.0, %v2202
      %v2204 = vpop.f32.mrf.mxu0
      %v2205 = vadd.f32 0.0, %v2204
      %2206 = vdwg.mxu0
      %v2207 = vadd.f32 %v1973, %v2128
      %v2208 = vadd.f32 %v1974, %v2130
      %v2209 = vadd.f32 %v1975, %v2133
      %v2210 = vadd.f32 %v1976, %v2135
      %v2211 = vadd.f32 %v1977, %v2138
      %v2212 = vadd.f32 %v1978, %v2140
      %v2213 = vadd.f32 %v1979, %v2143
      %v2214 = vadd.f32 %v1980, %v2145
      %v2215 = vadd.f32 %v1981, %v2148
      %v2216 = vadd.f32 %v1982, %v2150
      %v2217 = vadd.f32 %v1983, %v2153
      %v2218 = vadd.f32 %v1984, %v2155
      %v2219 = vadd.f32 %v1985, %v2158
      %v2220 = vadd.f32 %v1986, %v2160
      %v2221 = vadd.f32 %v1987, %v2163
      %v2222 = vadd.f32 %v1988, %v2165
      %v2223 = vadd.f32 %v1989, %v2168
      %v2224 = vadd.f32 %v1990, %v2170
      %v2225 = vadd.f32 %v1991, %v2173
      %v2226 = vadd.f32 %v1992, %v2175
      %v2227 = vadd.f32 %v1993, %v2178
      %v2228 = vadd.f32 %v1994, %v2180
      %v2229 = vadd.f32 %v1995, %v2183
      %v2230 = vadd.f32 %v1996, %v2185
      %v2231 = vadd.f32 %v1997, %v2188
      %v2232 = vadd.f32 %v1998, %v2190
      %v2233 = vadd.f32 %v1999, %v2193
      %v2234 = vadd.f32 %v2000, %v2195
      %v2235 = vadd.f32 %v2001, %v2198
      %v2236 = vadd.f32 %v2002, %v2200
      %v2237 = vadd.f32 %v2003, %v2203
      %v2238 = vadd.f32 %v2004, %v2205
      %v2239 = vld [vmem:[%s2] sm:$0x1]
      %v2241 = vperm.slane %v2239, 0
      %v2243 = vadd.f32 %v2207, %v2241
      %v2244 = vadd.f32 %v2208, %v2241
      %v2245 = vadd.f32 %v2209, %v2241
      %v2246 = vadd.f32 %v2210, %v2241
      %v2247 = vadd.f32 %v2211, %v2241
      %v2248 = vadd.f32 %v2212, %v2241
      %v2249 = vadd.f32 %v2213, %v2241
      %v2250 = vadd.f32 %v2214, %v2241
      %v2251 = vadd.f32 %v2215, %v2241
      %v2252 = vadd.f32 %v2216, %v2241
      %v2253 = vadd.f32 %v2217, %v2241
      %v2254 = vadd.f32 %v2218, %v2241
      %v2255 = vadd.f32 %v2219, %v2241
      %v2256 = vadd.f32 %v2220, %v2241
      %v2257 = vadd.f32 %v2221, %v2241
      %v2258 = vadd.f32 %v2222, %v2241
      %v2259 = vadd.f32 %v2223, %v2241
      %v2260 = vadd.f32 %v2224, %v2241
      %v2261 = vadd.f32 %v2225, %v2241
      %v2262 = vadd.f32 %v2226, %v2241
      %v2263 = vadd.f32 %v2227, %v2241
      %v2264 = vadd.f32 %v2228, %v2241
      %v2265 = vadd.f32 %v2229, %v2241
      %v2266 = vadd.f32 %v2230, %v2241
      %v2267 = vadd.f32 %v2231, %v2241
      %v2268 = vadd.f32 %v2232, %v2241
      %v2269 = vadd.f32 %v2233, %v2241
      %v2270 = vadd.f32 %v2234, %v2241
      %v2271 = vadd.f32 %v2235, %v2241
      %v2272 = vadd.f32 %v2236, %v2241
      %v2273 = vadd.f32 %v2237, %v2241
      %v2274 = vadd.f32 %v2238, %v2241
      %2275 = vst [vmem:[%s194] sm:$0xff] %v2243
      %2276 = vst [vmem:[%s194 + $0x8] sm:$0xff] %v2244
      %2277 = vst [vmem:[%s194 + $0x10] sm:$0xff] %v2245
      %2278 = vst [vmem:[%s194 + $0x18] sm:$0xff] %v2246
      %2279 = vst [vmem:[%s194 + $0x20] sm:$0xff] %v2247
      %2280 = vst [vmem:[%s194 + $0x28] sm:$0xff] %v2248
      %2281 = vst [vmem:[%s194 + $0x30] sm:$0xff] %v2249
      %2282 = vst [vmem:[%s194 + $0x38] sm:$0xff] %v2250
      %2283 = vst [vmem:[%s194 + $0x40] sm:$0xff] %v2251
      %2284 = vst [vmem:[%s194 + $0x48] sm:$0xff] %v2252
      %2285 = vst [vmem:[%s194 + $0x50] sm:$0xff] %v2253
      %2286 = vst [vmem:[%s194 + $0x58] sm:$0xff] %v2254
      %2287 = vst [vmem:[%s194 + $0x60] sm:$0xff] %v2255
      %2288 = vst [vmem:[%s194 + $0x68] sm:$0xff] %v2256
      %2289 = vst [vmem:[%s194 + $0x70] sm:$0xff] %v2257
      %2290 = vst [vmem:[%s194 + $0x78] sm:$0xff] %v2258
      %2291 = vst [vmem:[%s194 + $0x80] sm:$0xff] %v2259
      %2292 = vst [vmem:[%s194 + $0x88] sm:$0xff] %v2260
      %2293 = vst [vmem:[%s194 + $0x90] sm:$0xff] %v2261
      %2294 = vst [vmem:[%s194 + $0x98] sm:$0xff] %v2262
      %2295 = vst [vmem:[%s194 + $0xa0] sm:$0xff] %v2263
      %2296 = vst [vmem:[%s194 + $0xa8] sm:$0xff] %v2264
      %2297 = vst [vmem:[%s194 + $0xb0] sm:$0xff] %v2265
      %2298 = vst [vmem:[%s194 + $0xb8] sm:$0xff] %v2266
      %2299 = vst [vmem:[%s194 + $0xc0] sm:$0xff] %v2267
      %2300 = vst [vmem:[%s194 + $0xc8] sm:$0xff] %v2268
      %2301 = vst [vmem:[%s194 + $0xd0] sm:$0xff] %v2269
      %2302 = vst [vmem:[%s194 + $0xd8] sm:$0xff] %v2270
      %2303 = vst [vmem:[%s194 + $0xe0] sm:$0xff] %v2271
      %2304 = vst [vmem:[%s194 + $0xe8] sm:$0xff] %v2272
      %2305 = vst [vmem:[%s194 + $0xf0] sm:$0xff] %v2273
      %2306 = vst [vmem:[%s194 + $0xf8] sm:$0xff] %v2274
      %s2307 = smul.u32 16, %s19
      %p2308 = scmp.lt.s32.totalorder %s18, 1
      %s2309 = scalar_select %p2308, %s18, 1
      %p2310 = scmp.lt.s32.totalorder %s2307, 15
      %s2311 = scalar_select %p2310, %s2307, 15
      %s2312 = smul.addr %s2311, 2
      %s2313 = smul.addr %s2309, 32
      %s2314 = sadd.s32 %s2312, %s2313
      %s2315 = smul.addr %s2314, 8
      %s2316 = scalar_lea.vmem %s3, %s2315
      // Predicated region
      $region33: #{depthwise_separable_conv2d.1} parent=31 // pred_check
        %p2317 = pneg %p114
      $region34: #{depthwise_separable_conv2d.1} parent=31 // pred_check_branch
        %2319 = sbr.rel (%p2317) target = $region36
      $region35: #{depthwise_separable_conv2d.1} parent=31 // pred_region
        %s2320 = smul.u32 16, %s19
      $region36: #{depthwise_separable_conv2d.1} parent=31 // pred_fallthru
        _
    $region32: #{depthwise_separable_conv2d.1} parent=5 // pred_fallthru
      _
    %p2321 = scmp.le.s32.totalorder 2, %s9
    // Predicated region
    $region37: #{depthwise_separable_conv2d.1} parent=5 // pred_check
      %p2322 = pneg %p2321
    $region38: #{depthwise_separable_conv2d.1} parent=5 // pred_check_branch
      %2324 = sbr.rel (%p2322) target = $region40
    $region39: #{depthwise_separable_conv2d.1} parent=5 // pred_region
      %s2325 = ssub.s32 %s9, 2
      // Predicated region
      $region41: #{depthwise_separable_conv2d.1} parent=39 // pred_check
        %p2326 = pneg %p120
      $region42: #{depthwise_separable_conv2d.1} parent=39 // pred_check_branch
        %2328 = sbr.rel (%p2326) target = $region44
      $region43: #{depthwise_separable_conv2d.1} parent=39 // pred_region
        %s2329 = smul.u32 16, %s21
        %p2330 = scmp.lt.s32.totalorder %s20, 1
        %s2331 = scalar_select %p2330, %s20, 1
        %p2332 = scmp.lt.s32.totalorder %s2329, 15
        %s2333 = scalar_select %p2332, %s2329, 15
        %s2334 = smul.addr %s2333, 2
        %s2335 = smul.addr %s2331, 32
        %s2336 = sadd.s32 %s2334, %s2335
        %s2337 = smul.addr %s2336, 8
        %s2338 = scalar_lea.vmem %s3, %s2337
      $region44: #{depthwise_separable_conv2d.1} parent=39 // pred_fallthru
        _
    $region40: #{depthwise_separable_conv2d.1} parent=5 // pred_fallthru
      _
  $region6: #{depthwise_separable_conv2d.1} parent=0 // loop_footer
    %s13 = sadd.s32 1, %s9
  $region7: #{depthwise_separable_conv2d.1} parent=0 // loop_footer_branch
    %8 = sbr.rel target = $region3
  $region8: #{depthwise_separable_conv2d.1} parent=0 // loop_exit
    _

</llo_original>
